<compile_context>
chip_gen: v7x
topology: tpu7x:2x2x1
jax: 0.10.0
libtpu: 0.0.40
codegen_flags: <defaults>
</compile_context>

<pallas_src>
import functools
import math

import jax
import jax.numpy as jnp
from jax.experimental import pallas as pl
from jax.experimental.pallas import tpu as pltpu


# ---------------------------------------------------------------------------
# Helpers
# ---------------------------------------------------------------------------
def _const_spec(shape):
    """BlockSpec for a grid-invariant operand: single-buffered (Buffered(1))
    so it is DMA'd once and never double-buffered (saves VMEM, esp. v7x)."""
    idx = lambda *_: (0,) * len(shape)
    try:
        return pl.BlockSpec(shape, idx, pipeline_mode=pl.Buffered(1))
    except Exception:  # older API without pipeline_mode
        return pl.BlockSpec(shape, idx)


def _pick_seq_tile(seq_len):
    """Largest divisor of seq_len that is <= 512 (and >= 16 when possible):
    bounds VMEM for long sequences while giving the s-pipeline work to
    overlap and feeding multiple TensorCores with grid points."""
    for cand in range(min(seq_len, 512), 15, -1):
        if seq_len % cand == 0:
            return cand
    return seq_len


def _pick_vmem_limit():
    """Generation-aware scoped-VMEM limit: ~80% of per-core capacity
    (~51 MiB on v7x, ~102 MiB on v5e/v6e), fallback 64 MiB."""
    try:
        info = pltpu.get_tpu_info()
        for name in ("vmem_capacity_bytes", "vmem_size_bytes", "vmem_bytes"):
            cap = getattr(info, name, None)
            if cap:
                return int(cap * 0.8)
    except Exception:
        pass
    return 64 * 1024 * 1024


# ---------------------------------------------------------------------------
# Pass 1: per-batch Galerkin context  KV = blockdiag( LN(K)^T LN(V) ) / S
# ---------------------------------------------------------------------------
def _galerkin_kv_kernel(x_ref, wk_ref, wv_ref, gk_ref, bk_ref, gv_ref, bv_ref,
                        p_ref, kv_ref, acc_ref, *, num_heads, head_dim,
                        seq_len, ln_eps, layer_norm, per_head, compute_dtype):
    s = pl.program_id(1)

    x = x_ref[0]                                               # [TS, E] compute_dtype
    # Two separate projections (rather than one fused [E,2E] matmul) so K and
    # V never have to be sliced out of a non-128-lane-aligned split point.
    k = jnp.dot(x, wk_ref[...], preferred_element_type=jnp.float32)   # [TS,E] f32
    v = jnp.dot(x, wv_ref[...], preferred_element_type=jnp.float32)   # [TS,E] f32

    if layer_norm:
        p = p_ref[...]                                         # [E,E] compute_dtype (1/D in-head)

        def seg_ln(t, gamma, beta):
            # Per-head LayerNorm via MXU "segmented reductions" (no XLU lane
            # reductions, no per-head slicing).  Reduction-matmul operands in
            # compute_dtype (bf16 on the MXU), accumulation + LN arithmetic in
            # f32, rsqrt on the EUP.
            mean = jnp.dot(t.astype(compute_dtype), p,
                           preferred_element_type=jnp.float32)
            ex2 = jnp.dot((t * t).astype(compute_dtype), p,
                          preferred_element_type=jnp.float32)
            var = jnp.maximum(ex2 - mean * mean, 0.0)          # clamp cancellation
            return (t - mean) * jax.lax.rsqrt(var + ln_eps) * gamma + beta

        k = seg_ln(k, gk_ref[...], bk_ref[...])
        v = seg_ln(v, gv_ref[...], bv_ref[...])

    kc = k.astype(compute_dtype)
    vc = v.astype(compute_dtype)

    if per_head:
        # Lane-aligned per-head K^T V: H matmuls of [TS,D]x[TS,D] -> [D,D],
        # H x fewer FLOPs than the full-width product (nothing is masked away).
        D = head_dim
        head_tiles = []
        for h in range(num_heads):
            head_tiles.append(jax.lax.dot_general(
                kc[:, h * D:(h + 1) * D], vc[:, h * D:(h + 1) * D],
                dimension_numbers=(((0,), (0,)), ((), ())),
                preferred_element_type=jnp.float32))           # [D, D]
        kv_tile = jnp.stack(head_tiles, axis=0)                # [H, D, D]
    else:
        # Full-width K^T V (all heads at once); off-diagonal head blocks are
        # discarded by the exact block-diagonal mask at the end.
        kv_tile = jax.lax.dot_general(
            kc, vc, dimension_numbers=(((0,), (0,)), ((), ())),
            preferred_element_type=jnp.float32)                # [E, E]

    # f32 scratch accumulation across sequence tiles; the HBM output is
    # written exactly once, on the last tile.
    @pl.when(s == 0)
    def _():
        acc_ref[...] = kv_tile

    @pl.when(s != 0)
    def _():
        acc_ref[...] += kv_tile

    @pl.when(s == pl.num_programs(1) - 1)
    def _():
        inv_s = jnp.float32(1.0 / seq_len)
        if per_head:
            kv_ref[0] = (acc_ref[...] * inv_s).astype(kv_ref.dtype)
        else:
            # Exact 0/1 block-diagonal head mask derived from p (p != 0),
            # fused with the 1/seq_len Galerkin normalization in one VPU pass.
            mask_scale = jnp.where(p_ref[...] != 0, inv_s, jnp.float32(0.0))
            kv_ref[0] = (acc_ref[...] * mask_scale).astype(kv_ref.dtype)


# ---------------------------------------------------------------------------
# Pass 2: out = x @ W_eff[b] + b_o   (single matmul; W_eff folded host-side)
# ---------------------------------------------------------------------------
def _galerkin_out_kernel(x_ref, weff_ref, bo_ref, o_ref):
    out = jnp.dot(x_ref[0], weff_ref[0],
                  preferred_element_type=jnp.float32) + bo_ref[...]
    o_ref[0] = out.astype(o_ref.dtype)


# ---------------------------------------------------------------------------
# Host-side wrapper
# ---------------------------------------------------------------------------
def galerkin_self_attention(x, params, *, num_heads, layer_norm=True,
                            seq_tile=None, compute_dtype=jnp.bfloat16,
                            out_dtype=jnp.float32, per_head_kv=None):
    """x: [B, S, E].  Returns [B, S, out_dim] in `out_dtype`."""
    B, S, E = x.shape
    assert E % num_heads == 0
    D = E // num_heads
    O = params["wo"].shape[0]

    if per_head_kv is None:
        # Per-head K^T V only pays off when each head fills the MXU lanes.
        per_head_kv = (D % 128 == 0) and num_heads > 1

    if seq_tile is None:
        seq_tile = _pick_seq_tile(S)
    assert S % seq_tile == 0
    n_s = S // seq_tile

    # PyTorch nn.Linear stores weight as (out, in); pre-transpose so the kernel
    # does plain x @ W.  Matmul operands in compute_dtype (bf16 by default),
    # f32 accumulation inside the kernels.
    wkT = params["wk"].T.astype(compute_dtype)                              # [E, E]
    wvT = params["wv"].T.astype(compute_dtype)                              # [E, E]
    bo = params["bo"].reshape(1, O).astype(jnp.float32)

    # LayerNorm affine params tiled across heads -> [1, E]; LN math stays f32.
    def tile_heads(a):
        return jnp.tile(a.reshape(1, D), (1, num_heads)).astype(jnp.float32)

    gk = tile_heads(params["ln_key_gamma"])
    bk = tile_heads(params["ln_key_beta"])
    gv = tile_heads(params["ln_value_gamma"])
    bv = tile_heads(params["ln_value_beta"])

    # Head "segment" matrix: 1/D inside each head's DxD block, in
    # compute_dtype so the LN-stat matmuls run at bf16 MXU throughput.  Its
    # nonzero pattern also provides the exact 0/1 block-diagonal mask.
    head_ids = jnp.arange(E) // D
    p = ((head_ids[:, None] == head_ids[None, :]).astype(jnp.float32) / D
         ).astype(compute_dtype)                                            # [E, E]

    x_c = x.astype(compute_dtype)
    vmem_limit = _pick_vmem_limit()

    # --- pass 1: per-batch Galerkin context --------------------------------
    if per_head_kv:
        kv_shape = (B, num_heads, D, D)
        kv_block = (1, num_heads, D, D)
        kv_index = lambda b, s: (b, 0, 0, 0)
        acc_shape = (num_heads, D, D)
    else:
        kv_shape = (B, E, E)
        kv_block = (1, E, E)
        kv_index = lambda b, s: (b, 0, 0)
        acc_shape = (E, E)

    kv = pl.pallas_call(
        functools.partial(
            _galerkin_kv_kernel, num_heads=num_heads, head_dim=D, seq_len=S,
            ln_eps=1e-5, layer_norm=layer_norm, per_head=per_head_kv,
            compute_dtype=compute_dtype),
        out_shape=jax.ShapeDtypeStruct(kv_shape, jnp.float32),
        grid_spec=pltpu.PrefetchScalarGridSpec(
            num_scalar_prefetch=0,
            grid=(B, n_s),
            in_specs=[
                pl.BlockSpec((1, seq_tile, E), lambda b, s: (b, s, 0)),  # x
                _const_spec((E, E)),          # wk^T
                _const_spec((E, E)),          # wv^T
                _const_spec((1, E)),          # ln_key gamma
                _const_spec((1, E)),          # ln_key beta
                _const_spec((1, E)),          # ln_value gamma
                _const_spec((1, E)),          # ln_value beta
                _const_spec((E, E)),          # head segment / mask matrix
            ],
            out_specs=pl.BlockSpec(kv_block, kv_index),       # resident over s
            scratch_shapes=[pltpu.VMEM(acc_shape, jnp.float32)],
        ),
        compiler_params=pltpu.CompilerParams(
            dimension_semantics=("parallel", "arbitrary"),
            vmem_limit_bytes=vmem_limit),
    )(x_c, wkT, wvT, gk, bk, gv, bv, p)

    # --- tiny per-batch fold (plain XLA, f32): W_eff = Wq^T KV_bd Wo^T ------
    hi = jax.lax.Precision.HIGHEST
    wqT_f32 = params["wq"].T.astype(jnp.float32)                            # [E, E]
    woT_f32 = params["wo"].T.astype(jnp.float32)                            # [E, O]
    kv_f32 = kv.astype(jnp.float32)
    if per_head_kv:
        wq_h = wqT_f32.reshape(E, num_heads, D)                             # [E, H, D]
        wo_h = woT_f32.reshape(num_heads, D, O)                             # [H, D, O]
        tmp = jnp.einsum("bhdf,hfo->bhdo", kv_f32, wo_h, precision=hi)
        weff = jnp.einsum("ehd,bhdo->beo", wq_h, tmp, precision=hi)         # [B, E, O]
    else:
        tmp = jnp.einsum("de,bef->bdf", wqT_f32, kv_f32, precision=hi)
        weff = jnp.einsum("bdf,fo->bdo", tmp, woT_f32, precision=hi)        # [B, E, O]
    weff_c = weff.astype(compute_dtype)

    # --- pass 2: out = x @ W_eff[b] + b_o -----------------------------------
    out = pl.pallas_call(
        _galerkin_out_kernel,
        out_shape=jax.ShapeDtypeStruct((B, S, O), out_dtype),
        grid_spec=pltpu.PrefetchScalarGridSpec(
            num_scalar_prefetch=0,
            grid=(B, n_s),
            in_specs=[
                pl.BlockSpec((1, seq_tile, E), lambda b, s: (b, s, 0)),  # x
                pl.BlockSpec((1, E, O), lambda b, s: (b, 0, 0)),         # W_eff[b]
                _const_spec((1, O)),                                     # b_o
            ],
            out_specs=pl.BlockSpec((1, seq_tile, O), lambda b, s: (b, s, 0)),
        ),
        compiler_params=pltpu.CompilerParams(
            dimension_semantics=("parallel", "parallel"),
            vmem_limit_bytes=vmem_limit),
    )(x_c, weff_c, bo)

    return out


# ---------------------------------------------------------------------------
# Deterministic parameter init (matches shapes / scheme of the PyTorch module)
# ---------------------------------------------------------------------------
def init_params(key, embed_dim, out_dim, num_heads):
    D = embed_dim // num_heads
    kq, kk, kv, kwo, kbo = jax.random.split(key, 5)

    def diag_dominant(k):
        # Section-5 "diagonal domination" init of the Galerkin Transformer.
        spread = math.sqrt(3.0 / embed_dim)
        gain, delta = 0.01, 0.01
        w = jax.random.uniform(
            k, (embed_dim, embed_dim), jnp.float32, minval=-spread, maxval=spread)
        return w * gain + delta * jnp.eye(embed_dim, dtype=jnp.float32)

    bound = 1.0 / math.sqrt(embed_dim)  # default nn.Linear init scale
    return {
        "wq": diag_dominant(kq),
        "wk": diag_dominant(kk),
        "wv": diag_dominant(kv),
        "wo": jax.random.uniform(
            kwo, (out_dim, embed_dim), jnp.float32, minval=-bound, maxval=bound),
        "bo": jax.random.uniform(
            kbo, (out_dim,), jnp.float32, minval=-bound, maxval=bound),
        "ln_key_gamma": jnp.ones((D,), jnp.float32),
        "ln_key_beta": jnp.zeros((D,), jnp.float32),
        "ln_value_gamma": jnp.ones((D,), jnp.float32),
        "ln_value_beta": jnp.zeros((D,), jnp.float32),
    }


# ---------------------------------------------------------------------------
# Pure-JAX reference (mirrors the PyTorch forward)
# ---------------------------------------------------------------------------
def reference(x, params, *, num_heads):
    B, S, E = x.shape
    D = E // num_heads

    def split_heads(t):  # 'b s (h d) -> b h s d'
        return t.reshape(B, S, num_heads, D).transpose(0, 2, 1, 3)

    q = split_heads(x @ params["wq"].T)
    k = split_heads(x @ params["wk"].T)
    v = split_heads(x @ params["wv"].T)

    def ln(t, g, b, eps=1e-5):
        m = t.mean(-1, keepdims=True)
        var = ((t - m) ** 2).mean(-1, keepdims=True)
        return (t - m) / jnp.sqrt(var + eps) * g + b

    k = ln(k, params["ln_key_gamma"], params["ln_key_beta"])
    v = ln(v, params["ln_value_gamma"], params["ln_value_beta"])

    # Galerkin attention: Q (K^T V) / seq_len, no softmax.
    kv = jnp.einsum("bhsd,bhse->bhde", k, v) / S
    ga = jnp.einsum("bhsd,bhde->bhse", q, kv)
    ga = ga.transpose(0, 2, 1, 3).reshape(B, S, E)
    return ga @ params["wo"].T + params["bo"]


if __name__ == "__main__":
    key = jax.random.PRNGKey(0)
    kx, kp, kx2, kp2 = jax.random.split(key, 4)

    # --- test 1: module-consistent small shapes (full-width KV path) --------
    B, S, E, H, O = 2, 16, 32, 4, 32
    x = jax.random.normal(kx, (B, S, E), jnp.float32)
    params = init_params(kp, E, O, H)
    ref = reference(x, params, num_heads=H)

    # f32 compute path, explicit sequence tiling (exercises the s-reduction):
    out_f32 = galerkin_self_attention(
        x, params, num_heads=H, seq_tile=8, compute_dtype=jnp.float32)
    out_f32 = jax.block_until_ready(out_f32)
    assert out_f32.shape == (B, S, O)
    assert jnp.allclose(out_f32, ref, rtol=1e-4, atol=1e-4), "f32 mismatch vs. reference"

    # bf16 matmul-operand fast path (f32 accumulation / LN math), auto tile:
    out_bf16 = galerkin_self_attention(x, params, num_heads=H)
    out_bf16 = jax.block_until_ready(out_bf16)
    assert jnp.allclose(out_bf16, ref, rtol=2e-2, atol=2e-2), "bf16 mismatch vs. reference"

    # --- test 2: lane-aligned head_dim exercises the per-head K^T V path ----
    B2, S2, E2, H2, O2 = 1, 32, 256, 2, 128
    x2 = jax.random.normal(kx2, (B2, S2, E2), jnp.float32)
    params2 = init_params(kp2, E2, O2, H2)
    ref2 = reference(x2, params2, num_heads=H2)

    out2 = galerkin_self_attention(
        x2, params2, num_heads=H2, seq_tile=16, compute_dtype=jnp.float32)
    out2 = jax.block_until_ready(out2)
    assert out2.shape == (B2, S2, O2)
    assert jnp.allclose(out2, ref2, rtol=1e-3, atol=1e-3), "per-head KV mismatch vs. reference"

    print("KERNEL_OK")
</pallas_src>

<mosaic_0001>
module attributes {stable_mosaic.version = 11 : i64} {
  func.func @_galerkin_kv_kernel(%arg0: i32, %arg1: i32, %arg2: memref<1x8x32xf32, #tpu.memory_space<vmem>>, %arg3: memref<32x32xf32, #tpu.memory_space<vmem>>, %arg4: memref<32x32xf32, #tpu.memory_space<vmem>>, %arg5: memref<1x32xf32, #tpu.memory_space<vmem>>, %arg6: memref<1x32xf32, #tpu.memory_space<vmem>>, %arg7: memref<1x32xf32, #tpu.memory_space<vmem>>, %arg8: memref<1x32xf32, #tpu.memory_space<vmem>>, %arg9: memref<32x32xf32, #tpu.memory_space<vmem>>, %arg10: memref<1x32x32xf32, #tpu.memory_space<vmem>>, %arg11: memref<32x32xf32, #tpu.memory_space<vmem>>) attributes {dimension_semantics = [#tpu.dimension_semantics<parallel>, #tpu.dimension_semantics<arbitrary>], iteration_bounds = array<i64: 2, 2>, scalar_prefetch = 0 : i64, scratch_operands = 1 : i64, tpu.core_type = #tpu.core_type<tc>, window_params = [{transform_indices = @transform_0, window_bounds = array<i64: 1, 8, 32>}, {pipeline_mode = #tpu.pipeline_mode<synchronous>, transform_indices = @transform_1, window_bounds = array<i64: 32, 32>}, {pipeline_mode = #tpu.pipeline_mode<synchronous>, transform_indices = @transform_2, window_bounds = array<i64: 32, 32>}, {pipeline_mode = #tpu.pipeline_mode<synchronous>, transform_indices = @transform_3, window_bounds = array<i64: 1, 32>}, {pipeline_mode = #tpu.pipeline_mode<synchronous>, transform_indices = @transform_4, window_bounds = array<i64: 1, 32>}, {pipeline_mode = #tpu.pipeline_mode<synchronous>, transform_indices = @transform_5, window_bounds = array<i64: 1, 32>}, {pipeline_mode = #tpu.pipeline_mode<synchronous>, transform_indices = @transform_6, window_bounds = array<i64: 1, 32>}, {pipeline_mode = #tpu.pipeline_mode<synchronous>, transform_indices = @transform_7, window_bounds = array<i64: 32, 32>}, {transform_indices = @transform_8, window_bounds = array<i64: 1, 32, 32>}]} {
    %c0 = arith.constant 0 : index
    %c0_0 = arith.constant 0 : index
    %c0_1 = arith.constant 0 : index
    %0 = vector.load %arg2[%c0, %c0_0, %c0_1] : memref<1x8x32xf32, #tpu.memory_space<vmem>>, vector<1x8x32xf32>
    %1 = vector.shape_cast %0 : vector<1x8x32xf32> to vector<8x32xf32>
    %c0_2 = arith.constant 0 : index
    %c0_3 = arith.constant 0 : index
    %2 = vector.load %arg3[%c0_2, %c0_3] : memref<32x32xf32, #tpu.memory_space<vmem>>, vector<32x32xf32>
    %cst = arith.constant dense<0.000000e+00> : vector<8x32xf32>
    %3 = tpu.matmul %1, %2, %cst {dimension_numbers = #tpu.dot_dimension_numbers<[1], [0], [0], [1], [0, 0, 1, 1], [], []>} : vector<8x32xf32>, vector<32x32xf32>, vector<8x32xf32> -> vector<8x32xf32>
    %c0_4 = arith.constant 0 : index
    %c0_5 = arith.constant 0 : index
    %4 = vector.load %arg4[%c0_4, %c0_5] : memref<32x32xf32, #tpu.memory_space<vmem>>, vector<32x32xf32>
    %cst_6 = arith.constant dense<0.000000e+00> : vector<8x32xf32>
    %5 = tpu.matmul %1, %4, %cst_6 {dimension_numbers = #tpu.dot_dimension_numbers<[1], [0], [0], [1], [0, 0, 1, 1], [], []>} : vector<8x32xf32>, vector<32x32xf32>, vector<8x32xf32> -> vector<8x32xf32>
    %c0_7 = arith.constant 0 : index
    %c0_8 = arith.constant 0 : index
    %6 = vector.load %arg9[%c0_7, %c0_8] : memref<32x32xf32, #tpu.memory_space<vmem>>, vector<32x32xf32>
    %c0_9 = arith.constant 0 : index
    %c0_10 = arith.constant 0 : index
    %7 = vector.load %arg5[%c0_9, %c0_10] : memref<1x32xf32, #tpu.memory_space<vmem>>, vector<1x32xf32>
    %c0_11 = arith.constant 0 : index
    %c0_12 = arith.constant 0 : index
    %8 = vector.load %arg6[%c0_11, %c0_12] : memref<1x32xf32, #tpu.memory_space<vmem>>, vector<1x32xf32>
    %cst_13 = arith.constant dense<0.000000e+00> : vector<8x32xf32>
    %9 = tpu.matmul %3, %6, %cst_13 {dimension_numbers = #tpu.dot_dimension_numbers<[1], [0], [0], [1], [0, 0, 1, 1], [], []>} : vector<8x32xf32>, vector<32x32xf32>, vector<8x32xf32> -> vector<8x32xf32>
    %10 = arith.mulf %3, %3 : vector<8x32xf32>
    %cst_14 = arith.constant dense<0.000000e+00> : vector<8x32xf32>
    %11 = tpu.matmul %10, %6, %cst_14 {dimension_numbers = #tpu.dot_dimension_numbers<[1], [0], [0], [1], [0, 0, 1, 1], [], []>} : vector<8x32xf32>, vector<32x32xf32>, vector<8x32xf32> -> vector<8x32xf32>
    %12 = arith.mulf %9, %9 : vector<8x32xf32>
    %13 = arith.subf %11, %12 : vector<8x32xf32>
    %cst_15 = arith.constant 0.000000e+00 : f32
    %14 = vector.broadcast %cst_15 : f32 to vector<8x32xf32>
    %15 = arith.maximumf %13, %14 : vector<8x32xf32>
    %16 = arith.subf %3, %9 : vector<8x32xf32>
    %cst_16 = arith.constant 9.99999974E-6 : f32
    %17 = vector.broadcast %cst_16 : f32 to vector<8x32xf32>
    %18 = arith.addf %15, %17 : vector<8x32xf32>
    %19 = math.rsqrt %18 : vector<8x32xf32>
    %20 = arith.mulf %16, %19 : vector<8x32xf32>
    %21 = vector.broadcast %7 : vector<1x32xf32> to vector<8x32xf32>
    %22 = arith.mulf %20, %21 : vector<8x32xf32>
    %23 = vector.broadcast %8 : vector<1x32xf32> to vector<8x32xf32>
    %24 = arith.addf %22, %23 : vector<8x32xf32>
    %c0_17 = arith.constant 0 : index
    %c0_18 = arith.constant 0 : index
    %25 = vector.load %arg7[%c0_17, %c0_18] : memref<1x32xf32, #tpu.memory_space<vmem>>, vector<1x32xf32>
    %c0_19 = arith.constant 0 : index
    %c0_20 = arith.constant 0 : index
    %26 = vector.load %arg8[%c0_19, %c0_20] : memref<1x32xf32, #tpu.memory_space<vmem>>, vector<1x32xf32>
    %cst_21 = arith.constant dense<0.000000e+00> : vector<8x32xf32>
    %27 = tpu.matmul %5, %6, %cst_21 {dimension_numbers = #tpu.dot_dimension_numbers<[1], [0], [0], [1], [0, 0, 1, 1], [], []>} : vector<8x32xf32>, vector<32x32xf32>, vector<8x32xf32> -> vector<8x32xf32>
    %28 = arith.mulf %5, %5 : vector<8x32xf32>
    %cst_22 = arith.constant dense<0.000000e+00> : vector<8x32xf32>
    %29 = tpu.matmul %28, %6, %cst_22 {dimension_numbers = #tpu.dot_dimension_numbers<[1], [0], [0], [1], [0, 0, 1, 1], [], []>} : vector<8x32xf32>, vector<32x32xf32>, vector<8x32xf32> -> vector<8x32xf32>
    %30 = arith.mulf %27, %27 : vector<8x32xf32>
    %31 = arith.subf %29, %30 : vector<8x32xf32>
    %cst_23 = arith.constant 0.000000e+00 : f32
    %32 = vector.broadcast %cst_23 : f32 to vector<8x32xf32>
    %33 = arith.maximumf %31, %32 : vector<8x32xf32>
    %34 = arith.subf %5, %27 : vector<8x32xf32>
    %cst_24 = arith.constant 9.99999974E-6 : f32
    %35 = vector.broadcast %cst_24 : f32 to vector<8x32xf32>
    %36 = arith.addf %33, %35 : vector<8x32xf32>
    %37 = math.rsqrt %36 : vector<8x32xf32>
    %38 = arith.mulf %34, %37 : vector<8x32xf32>
    %39 = vector.broadcast %25 : vector<1x32xf32> to vector<8x32xf32>
    %40 = arith.mulf %38, %39 : vector<8x32xf32>
    %41 = vector.broadcast %26 : vector<1x32xf32> to vector<8x32xf32>
    %42 = arith.addf %40, %41 : vector<8x32xf32>
    %cst_25 = arith.constant dense<0.000000e+00> : vector<32x32xf32>
    %43 = tpu.matmul %24, %42, %cst_25 {dimension_numbers = #tpu.dot_dimension_numbers<[0], [0], [1], [1], [0, 1, 1, 1], [], []>} : vector<8x32xf32>, vector<8x32xf32>, vector<32x32xf32> -> vector<32x32xf32>
    %c0_i32 = arith.constant 0 : i32
    %44 = arith.cmpi eq, %arg1, %c0_i32 : i32
    %45 = arith.extui %44 : i1 to i32
    %c0_i32_26 = arith.constant 0 : i32
    %46 = arith.cmpi ne, %45, %c0_i32_26 : i32
    scf.if %46 {
      %c0_30 = arith.constant 0 : index
      %c0_31 = arith.constant 0 : index
      %53 = vector.load %arg11[%c0_30, %c0_31] : memref<32x32xf32, #tpu.memory_space<vmem>>, vector<32x32xf32>
      tpu.vector_store %arg11[%c0_30, %c0_31], %43 {strides = array<i32>} : memref<32x32xf32, #tpu.memory_space<vmem>>, vector<32x32xf32>,
    } else {
    }
    %c0_i32_27 = arith.constant 0 : i32
    %47 = arith.cmpi ne, %arg1, %c0_i32_27 : i32
    %48 = arith.extui %47 : i1 to i32
    %c0_i32_28 = arith.constant 0 : i32
    %49 = arith.cmpi ne, %48, %c0_i32_28 : i32
    scf.if %49 {
      %c0_30 = arith.constant 0 : index
      %c0_31 = arith.constant 0 : index
      %53 = vector.load %arg11[%c0_30, %c0_31] : memref<32x32xf32, #tpu.memory_space<vmem>>, vector<32x32xf32>
      %54 = arith.addf %53, %43 : vector<32x32xf32>
      %c0_32 = arith.constant 0 : index
      %c0_33 = arith.constant 0 : index
      %55 = vector.load %arg11[%c0_32, %c0_33] : memref<32x32xf32, #tpu.memory_space<vmem>>, vector<32x32xf32>
      tpu.vector_store %arg11[%c0_32, %c0_33], %54 {strides = array<i32>} : memref<32x32xf32, #tpu.memory_space<vmem>>, vector<32x32xf32>,
    } else {
    }
    %c1_i32 = arith.constant 1 : i32
    %50 = arith.cmpi eq, %arg1, %c1_i32 : i32
    %51 = arith.extui %50 : i1 to i32
    %c0_i32_29 = arith.constant 0 : i32
    %52 = arith.cmpi ne, %51, %c0_i32_29 : i32
    scf.if %52 {
      %c0_30 = arith.constant 0 : index
      %c0_31 = arith.constant 0 : index
      %53 = vector.load %arg9[%c0_30, %c0_31] : memref<32x32xf32, #tpu.memory_space<vmem>>, vector<32x32xf32>
      %cst_32 = arith.constant 0.000000e+00 : f32
      %54 = vector.broadcast %cst_32 : f32 to vector<32x32xf32>
      %55 = arith.cmpf one, %53, %54 : vector<32x32xf32>
      %cst_33 = arith.constant 6.250000e-02 : f32
      %cst_34 = arith.constant 0.000000e+00 : f32
      %56 = vector.broadcast %cst_33 : f32 to vector<32x32xf32>
      %57 = vector.broadcast %cst_34 : f32 to vector<32x32xf32>
      %58 = arith.select %55, %56, %57 : vector<32x32xi1>, vector<32x32xf32>
      %c0_35 = arith.constant 0 : index
      %c0_36 = arith.constant 0 : index
      %59 = vector.load %arg11[%c0_35, %c0_36] : memref<32x32xf32, #tpu.memory_space<vmem>>, vector<32x32xf32>
      %60 = arith.mulf %59, %58 : vector<32x32xf32>
      %c0_37 = arith.constant 0 : index
      %c0_38 = arith.constant 0 : index
      %c0_39 = arith.constant 0 : index
      %61 = vector.load %arg10[%c0_37, %c0_38, %c0_39] : memref<1x32x32xf32, #tpu.memory_space<vmem>>, vector<1x32x32xf32>
      %62 = vector.shape_cast %61 : vector<1x32x32xf32> to vector<32x32xf32>
      %63 = vector.shape_cast %60 : vector<32x32xf32> to vector<1x32x32xf32>
      tpu.vector_store %arg10[%c0_37, %c0_38, %c0_39], %63 {strides = array<i32>} : memref<1x32x32xf32, #tpu.memory_space<vmem>>, vector<1x32x32xf32>,
    } else {
    }
    return
  }
  func.func @transform_0(%arg0: i32, %arg1: i32) -> (i32, i32, i32) {
    %c0_i32 = arith.constant 0 : i32
    %c0_i32_0 = arith.constant 0 : i32
    return %arg0, %arg1, %c0_i32 : i32, i32, i32
  }
  func.func @transform_1(%arg0: i32, %arg1: i32) -> (i32, i32) {
    %c0_i32 = arith.constant 0 : i32
    %c0_i32_0 = arith.constant 0 : i32
    %c0_i32_1 = arith.constant 0 : i32
    return %c0_i32, %c0_i32_0 : i32, i32
  }
  func.func @transform_2(%arg0: i32, %arg1: i32) -> (i32, i32) {
    %c0_i32 = arith.constant 0 : i32
    %c0_i32_0 = arith.constant 0 : i32
    %c0_i32_1 = arith.constant 0 : i32
    return %c0_i32, %c0_i32_0 : i32, i32
  }
  func.func @transform_3(%arg0: i32, %arg1: i32) -> (i32, i32) {
    %c0_i32 = arith.constant 0 : i32
    %c0_i32_0 = arith.constant 0 : i32
    %c0_i32_1 = arith.constant 0 : i32
    return %c0_i32, %c0_i32_0 : i32, i32
  }
  func.func @transform_4(%arg0: i32, %arg1: i32) -> (i32, i32) {
    %c0_i32 = arith.constant 0 : i32
    %c0_i32_0 = arith.constant 0 : i32
    %c0_i32_1 = arith.constant 0 : i32
    return %c0_i32, %c0_i32_0 : i32, i32
  }
  func.func @transform_5(%arg0: i32, %arg1: i32) -> (i32, i32) {
    %c0_i32 = arith.constant 0 : i32
    %c0_i32_0 = arith.constant 0 : i32
    %c0_i32_1 = arith.constant 0 : i32
    return %c0_i32, %c0_i32_0 : i32, i32
  }
  func.func @transform_6(%arg0: i32, %arg1: i32) -> (i32, i32) {
    %c0_i32 = arith.constant 0 : i32
    %c0_i32_0 = arith.constant 0 : i32
    %c0_i32_1 = arith.constant 0 : i32
    return %c0_i32, %c0_i32_0 : i32, i32
  }
  func.func @transform_7(%arg0: i32, %arg1: i32) -> (i32, i32) {
    %c0_i32 = arith.constant 0 : i32
    %c0_i32_0 = arith.constant 0 : i32
    %c0_i32_1 = arith.constant 0 : i32
    return %c0_i32, %c0_i32_0 : i32, i32
  }
  func.func @transform_8(%arg0: i32, %arg1: i32) -> (i32, i32, i32) {
    %c0_i32 = arith.constant 0 : i32
    %c0_i32_0 = arith.constant 0 : i32
    %c0_i32_1 = arith.constant 0 : i32
    return %arg0, %c0_i32, %c0_i32_0 : i32, i32, i32
  }
}

</mosaic_0001>

<llo_original>
// kernel: tpu_custom_call.1
$region0: #{tpu_custom_call.1}
  #allocation0 [shape = 'u32[]', space=smem, size = 0x4, offset = 0x4, fixed_abs, tag = 'smem constant byte address 0x4 - core index']
  #allocation1 [shape = 'u32[144,128]{1,0:T(1,128)}', space=vmem, size = 0x12000, scoped, tag = 'internal scratch']
  #allocation2 [shape = 'f32[32,32]{1,0:T(8,128)}', space=vmem, size = 0x4000, scoped, tag = 'scratch operand']
  %s0 = inlined_call_operand.hbm [shape: f32[2,16,32], index: 0, kind: input, shape index: {}]
  %s1 = inlined_call_operand.hbm [shape: f32[32,32], index: 1, kind: input, shape index: {}]
  %s2 = inlined_call_operand.hbm [shape: f32[32,32], index: 2, kind: input, shape index: {}]
  %s3 = inlined_call_operand.hbm [shape: f32[1,32], index: 3, kind: input, shape index: {}]
  %s4 = inlined_call_operand.hbm [shape: f32[1,32], index: 4, kind: input, shape index: {}]
  %s5 = inlined_call_operand.hbm [shape: f32[1,32], index: 5, kind: input, shape index: {}]
  %s6 = inlined_call_operand.hbm [shape: f32[1,32], index: 6, kind: input, shape index: {}]
  %s7 = inlined_call_operand.hbm [shape: f32[32,32], index: 7, kind: input, shape index: {}]
  %s8 = inlined_call_operand.hbm [shape: f32[2,32,32], index: 8, kind: output, shape index: {}]
  %s9 = sld [smem:[#allocation0]]
  $region109: #{tpu_custom_call.1} parent=0
    _
  %s11 = ssub.s32 1, %s9
  %s12 = scalar_select 0, %s11, %s9
  $region1: #{tpu_custom_call.1} parent=0
    #allocation3 [shape = 'u8[8192]{0}', space=vmem, size = 0x2000, scoped, tag = 'input window, operand 0']
    #allocation4 [shape = 's32[2]{0}', space=sflag, size = 0x8, scoped, tag = 'scoped memory for tpu_custom_call.1']
    #allocation5 [shape = 's32[2]{0}', space=sflag, size = 0x8, scoped, tag = 'scoped memory for tpu_custom_call.1']
    #allocation6 [shape = 'u8[16384]{0}', space=vmem, size = 0x4000, scoped, tag = 'input window, operand 1, single buffered']
    #allocation7 [shape = 's32[1]{0}', space=sflag, size = 0x4, scoped, tag = 'scoped memory for tpu_custom_call.1']
    #allocation8 [shape = 'u8[16384]{0}', space=vmem, size = 0x4000, scoped, tag = 'input window, operand 2, single buffered']
    #allocation9 [shape = 'u8[512]{0}', space=vmem, size = 0x400, scoped, tag = 'input window, operand 3, single buffered']
    #allocation10 [shape = 's32[1]{0}', space=sflag, size = 0x4, scoped, tag = 'scoped memory for tpu_custom_call.1']
    #allocation11 [shape = 'u8[512]{0}', space=vmem, size = 0x400, scoped, tag = 'input window, operand 4, single buffered']
    #allocation12 [shape = 'u8[512]{0}', space=vmem, size = 0x400, scoped, tag = 'input window, operand 5, single buffered']
    #allocation13 [shape = 's32[1]{0}', space=sflag, size = 0x4, scoped, tag = 'scoped memory for tpu_custom_call.1']
    #allocation14 [shape = 'u8[512]{0}', space=vmem, size = 0x400, scoped, tag = 'input window, operand 6, single buffered']
    #allocation15 [shape = 'u8[16384]{0}', space=vmem, size = 0x4000, scoped, tag = 'input window, operand 7, single buffered']
    #allocation16 [shape = 's32[1]{0}', space=sflag, size = 0x4, scoped, tag = 'scoped memory for tpu_custom_call.1']
    #allocation17 [shape = 'u8[32768]{0}', space=vmem, size = 0x8000, scoped, tag = 'output window, operand 0']
    %13 = vsyncpa [#allocation4], 0
    %s14 = scalar_lea.sflag [#allocation4], 1
    %15 = vsyncpa %s14, 0
    %16 = vsyncpa [#allocation7], 0
    %17 = vsyncpa [#allocation10], 0
    %18 = vsyncpa [#allocation13], 0
    %19 = vsyncpa [#allocation16], 0
    %20 = vsyncpa [#allocation5], 0
    %s21 = scalar_lea.sflag [#allocation5], 1
    %22 = vsyncpa %s21, 0
    loop: start=0, step=1, limit=6
    $region2: #{tpu_custom_call.1} parent=1 // loop_pre_header
      _
    $region3: #{tpu_custom_call.1} parent=1 // loop_header
      %s24 = sphi 0, %s28
      %p25 = scmp.ge.s32.totalorder %s24, 6
      %s31 = sphi 0, %s43
      %s32 = sphi 0, %s39
      %s33 = sphi 0, %s31
      %s34 = sphi 0, %s32
      %s35 = sphi 0, %s33
      %s36 = sphi 0, %s34
      %s48 = sphi 0, %s50
      %s51 = sphi 0, %s48
      %s52 = sphi 0, %s51
      %s68 = sphi 0, %s52
      %s72 = sphi 0, %s72
      %s74 = sphi 0, %s72
      %s75 = sphi 0, %s74
      %s89 = sphi 0, %s75
      %s93 = sphi 0, %s93
      %s95 = sphi 0, %s93
      %s96 = sphi 0, %s95
      %s110 = sphi 0, %s96
      %s114 = sphi 0, %s114
      %s116 = sphi 0, %s114
      %s117 = sphi 0, %s116
      %s131 = sphi 0, %s117
      %s135 = sphi 0, %s135
      %s137 = sphi 0, %s135
      %s138 = sphi 0, %s137
      %s152 = sphi 0, %s138
      %s156 = sphi 0, %s156
      %s158 = sphi 0, %s156
      %s159 = sphi 0, %s158
      %s173 = sphi 0, %s159
      %s177 = sphi 0, %s177
      %s179 = sphi 0, %s177
      %s180 = sphi 0, %s179
      %s194 = sphi 0, %s180
      %s198 = sphi 0, %s198
      %s200 = sphi 0, %s198
      %s201 = sphi 0, %s200
      %s215 = sphi 0, %s201
      %s221 = sphi 0, %s223
      %s224 = sphi 0, %s221
      %s225 = sphi 0, %s224
      %s241 = sphi 0, %s225
    $region4: #{tpu_custom_call.1} parent=1 // loop_header_branch
      %27 = sbr.rel (%p25) target = $region8
    $region5: #{tpu_custom_call.1} parent=1 // loop_body
      %s29 = ssub.s32 %s24, 1
      %s30 = ssub.s32 %s24, 2
      %s37 = sadd.s32 1, %s32
      %p38 = scmp.ge.s32.totalorder %s37, 2
      %s39 = scalar_select %p38, 0, %s37
      %s40 = sadd.s32 1, %s31
      %s41 = scalar_select %p38, %s40, %s31
      %p42 = scmp.ge.s32.totalorder %s41, 2
      %s43 = scalar_select %p42, 0, %s41
      %s44 = ssub.s32 %s31, %s43
      %s45 = ssub.s32 %s32, %s39
      %s46 = sor.u32 %s44, %s45
      %p47 = scmp.eq.s32.totalorder %s46, 0
      %s49 = sadd.s32 %s48, 1
      %s50 = scalar_select %p47, %s48, %s49
      %p53 = pneg %p47
      %p54 = scmp.eq.s32.totalorder %s24, 3
      %p55 = por %p53, %p54
      %p56 = scmp.ne.s32.totalorder %s48, %s51
      %p57 = scmp.eq.s32.totalorder %s24, 0
      %p58 = por %p56, %p57
      %p59 = scmp.ne.s32.totalorder %s48, %s51
      %p60 = scmp.eq.s32.totalorder %s29, 3
      %p61 = por %p59, %p60
      %p62 = scmp.ne.s32.totalorder %s51, %s52
      %p63 = scmp.eq.s32.totalorder %s29, 0
      %p64 = por %p62, %p63
      %p65 = scmp.ne.s32.totalorder %s51, %s52
      %p66 = scmp.eq.s32.totalorder %s30, 3
      %p67 = por %p65, %p66
      %p69 = scmp.ne.s32.totalorder %s52, %s68
      %p70 = scmp.eq.s32.totalorder %s30, 0
      %p71 = por %p69, %p70
      %s73 = sadd.s32 %s72, 1
      %p76 = scmp.eq.s32.totalorder %s24, 3
      %p77 = scmp.ne.s32.totalorder %s72, %s74
      %p78 = scmp.eq.s32.totalorder %s24, 0
      %p79 = por %p77, %p78
      %p80 = scmp.ne.s32.totalorder %s72, %s74
      %p81 = scmp.eq.s32.totalorder %s29, 3
      %p82 = por %p80, %p81
      %p83 = scmp.ne.s32.totalorder %s74, %s75
      %p84 = scmp.eq.s32.totalorder %s29, 0
      %p85 = por %p83, %p84
      %p86 = scmp.ne.s32.totalorder %s74, %s75
      %p87 = scmp.eq.s32.totalorder %s30, 3
      %p88 = por %p86, %p87
      %p90 = scmp.ne.s32.totalorder %s75, %s89
      %p91 = scmp.eq.s32.totalorder %s30, 0
      %p92 = por %p90, %p91
      %s94 = sadd.s32 %s93, 1
      %p97 = scmp.eq.s32.totalorder %s24, 3
      %p98 = scmp.ne.s32.totalorder %s93, %s95
      %p99 = scmp.eq.s32.totalorder %s24, 0
      %p100 = por %p98, %p99
      %p101 = scmp.ne.s32.totalorder %s93, %s95
      %p102 = scmp.eq.s32.totalorder %s29, 3
      %p103 = por %p101, %p102
      %p104 = scmp.ne.s32.totalorder %s95, %s96
      %p105 = scmp.eq.s32.totalorder %s29, 0
      %p106 = por %p104, %p105
      %p107 = scmp.ne.s32.totalorder %s95, %s96
      %p108 = scmp.eq.s32.totalorder %s30, 3
      %p109 = por %p107, %p108
      %p111 = scmp.ne.s32.totalorder %s96, %s110
      %p112 = scmp.eq.s32.totalorder %s30, 0
      %p113 = por %p111, %p112
      %s115 = sadd.s32 %s114, 1
      %p118 = scmp.eq.s32.totalorder %s24, 3
      %p119 = scmp.ne.s32.totalorder %s114, %s116
      %p120 = scmp.eq.s32.totalorder %s24, 0
      %p121 = por %p119, %p120
      %p122 = scmp.ne.s32.totalorder %s114, %s116
      %p123 = scmp.eq.s32.totalorder %s29, 3
      %p124 = por %p122, %p123
      %p125 = scmp.ne.s32.totalorder %s116, %s117
      %p126 = scmp.eq.s32.totalorder %s29, 0
      %p127 = por %p125, %p126
      %p128 = scmp.ne.s32.totalorder %s116, %s117
      %p129 = scmp.eq.s32.totalorder %s30, 3
      %p130 = por %p128, %p129
      %p132 = scmp.ne.s32.totalorder %s117, %s131
      %p133 = scmp.eq.s32.totalorder %s30, 0
      %p134 = por %p132, %p133
      %s136 = sadd.s32 %s135, 1
      %p139 = scmp.eq.s32.totalorder %s24, 3
      %p140 = scmp.ne.s32.totalorder %s135, %s137
      %p141 = scmp.eq.s32.totalorder %s24, 0
      %p142 = por %p140, %p141
      %p143 = scmp.ne.s32.totalorder %s135, %s137
      %p144 = scmp.eq.s32.totalorder %s29, 3
      %p145 = por %p143, %p144
      %p146 = scmp.ne.s32.totalorder %s137, %s138
      %p147 = scmp.eq.s32.totalorder %s29, 0
      %p148 = por %p146, %p147
      %p149 = scmp.ne.s32.totalorder %s137, %s138
      %p150 = scmp.eq.s32.totalorder %s30, 3
      %p151 = por %p149, %p150
      %p153 = scmp.ne.s32.totalorder %s138, %s152
      %p154 = scmp.eq.s32.totalorder %s30, 0
      %p155 = por %p153, %p154
      %s157 = sadd.s32 %s156, 1
      %p160 = scmp.eq.s32.totalorder %s24, 3
      %p161 = scmp.ne.s32.totalorder %s156, %s158
      %p162 = scmp.eq.s32.totalorder %s24, 0
      %p163 = por %p161, %p162
      %p164 = scmp.ne.s32.totalorder %s156, %s158
      %p165 = scmp.eq.s32.totalorder %s29, 3
      %p166 = por %p164, %p165
      %p167 = scmp.ne.s32.totalorder %s158, %s159
      %p168 = scmp.eq.s32.totalorder %s29, 0
      %p169 = por %p167, %p168
      %p170 = scmp.ne.s32.totalorder %s158, %s159
      %p171 = scmp.eq.s32.totalorder %s30, 3
      %p172 = por %p170, %p171
      %p174 = scmp.ne.s32.totalorder %s159, %s173
      %p175 = scmp.eq.s32.totalorder %s30, 0
      %p176 = por %p174, %p175
      %s178 = sadd.s32 %s177, 1
      %p181 = scmp.eq.s32.totalorder %s24, 3
      %p182 = scmp.ne.s32.totalorder %s177, %s179
      %p183 = scmp.eq.s32.totalorder %s24, 0
      %p184 = por %p182, %p183
      %p185 = scmp.ne.s32.totalorder %s177, %s179
      %p186 = scmp.eq.s32.totalorder %s29, 3
      %p187 = por %p185, %p186
      %p188 = scmp.ne.s32.totalorder %s179, %s180
      %p189 = scmp.eq.s32.totalorder %s29, 0
      %p190 = por %p188, %p189
      %p191 = scmp.ne.s32.totalorder %s179, %s180
      %p192 = scmp.eq.s32.totalorder %s30, 3
      %p193 = por %p191, %p192
      %p195 = scmp.ne.s32.totalorder %s180, %s194
      %p196 = scmp.eq.s32.totalorder %s30, 0
      %p197 = por %p195, %p196
      %s199 = sadd.s32 %s198, 1
      %p202 = scmp.eq.s32.totalorder %s24, 3
      %p203 = scmp.ne.s32.totalorder %s198, %s200
      %p204 = scmp.eq.s32.totalorder %s24, 0
      %p205 = por %p203, %p204
      %p206 = scmp.ne.s32.totalorder %s198, %s200
      %p207 = scmp.eq.s32.totalorder %s29, 3
      %p208 = por %p206, %p207
      %p209 = scmp.ne.s32.totalorder %s200, %s201
      %p210 = scmp.eq.s32.totalorder %s29, 0
      %p211 = por %p209, %p210
      %p212 = scmp.ne.s32.totalorder %s200, %s201
      %p213 = scmp.eq.s32.totalorder %s30, 3
      %p214 = por %p212, %p213
      %p216 = scmp.ne.s32.totalorder %s201, %s215
      %p217 = scmp.eq.s32.totalorder %s30, 0
      %p218 = por %p216, %p217
      %s219 = ssub.s32 %s31, %s43
      %p220 = scmp.eq.s32.totalorder %s219, 0
      %s222 = sadd.s32 %s221, 1
      %s223 = scalar_select %p220, %s221, %s222
      %p226 = pneg %p220
      %p227 = scmp.eq.s32.totalorder %s24, 3
      %p228 = por %p226, %p227
      %p229 = scmp.ne.s32.totalorder %s221, %s224
      %p230 = scmp.eq.s32.totalorder %s24, 0
      %p231 = por %p229, %p230
      %p232 = scmp.ne.s32.totalorder %s221, %s224
      %p233 = scmp.eq.s32.totalorder %s29, 3
      %p234 = por %p232, %p233
      %p235 = scmp.ne.s32.totalorder %s224, %s225
      %p236 = scmp.eq.s32.totalorder %s29, 0
      %p237 = por %p235, %p236
      %p238 = scmp.ne.s32.totalorder %s224, %s225
      %p239 = scmp.eq.s32.totalorder %s30, 3
      %p240 = por %p238, %p239
      %p242 = scmp.ne.s32.totalorder %s225, %s241
      %p243 = scmp.eq.s32.totalorder %s30, 0
      %p244 = por %p242, %p243
      %p245 = scmp.le.s32.totalorder 1, %s24
      %p246 = scmp.lt.s32.totalorder %s24, 5
      %p247 = pnand %p245, %p246
      %p248 = pneg %p247
      // Predicated region
      $region9: #{tpu_custom_call.1} parent=5 // pred_check
        _
      $region10: #{tpu_custom_call.1} parent=5 // pred_check_branch
        %250 = sbr.rel (%p247) target = $region12
      $region11: #{tpu_custom_call.1} parent=5 // pred_region
        %s251 = ssub.s32 %s24, 1
        // Predicated region
        $region13: #{tpu_custom_call.1} parent=11 // pred_check
          %p252 = pneg %p85
        $region14: #{tpu_custom_call.1} parent=11 // pred_check_branch
          %254 = sbr.rel (%p252) target = $region16
        $region15: #{tpu_custom_call.1} parent=11 // pred_region
          %s256 = ssub.s32 512, 512
          %257 = vsyncadd [#allocation7], %s256
          %s258 = sshll.u32 [#allocation6], 4
          %s259 = int_to_ptr.vmem [resolvable:$true] %s258
          %264 = dma.hbm_to_vmem [thread:$0]  %s1, 512, %s259, [#allocation7], 128, 128, 8
        $region16: #{tpu_custom_call.1} parent=11 // pred_fallthru
          _
        // Predicated region
        $region17: #{tpu_custom_call.1} parent=11 // pred_check
          %p265 = pneg %p106
        $region18: #{tpu_custom_call.1} parent=11 // pred_check_branch
          %267 = sbr.rel (%p265) target = $region20
        $region19: #{tpu_custom_call.1} parent=11 // pred_region
          %s269 = ssub.s32 512, 512
          %270 = vsyncadd [#allocation7], %s269
          %s271 = sshll.u32 [#allocation8], 4
          %s272 = int_to_ptr.vmem [resolvable:$true] %s271
          %277 = dma.hbm_to_vmem [thread:$0]  %s2, 512, %s272, [#allocation7], 128, 128, 8
        $region20: #{tpu_custom_call.1} parent=11 // pred_fallthru
          _
        // Predicated region
        $region21: #{tpu_custom_call.1} parent=11 // pred_check
          %p278 = pneg %p127
        $region22: #{tpu_custom_call.1} parent=11 // pred_check_branch
          %280 = sbr.rel (%p278) target = $region24
        $region23: #{tpu_custom_call.1} parent=11 // pred_region
          %s282 = ssub.s32 16, 16
          %283 = vsyncadd [#allocation10], %s282
          %s285 = sshll.u32 [#allocation9], 4
          %s286 = int_to_ptr.vmem [resolvable:$true] %s285
          %288 = dma.hbm_to_vmem [thread:$0]  %s3, 16, %s286, [#allocation10]
        $region24: #{tpu_custom_call.1} parent=11 // pred_fallthru
          _
        // Predicated region
        $region25: #{tpu_custom_call.1} parent=11 // pred_check
          %p289 = pneg %p148
        $region26: #{tpu_custom_call.1} parent=11 // pred_check_branch
          %291 = sbr.rel (%p289) target = $region28
        $region27: #{tpu_custom_call.1} parent=11 // pred_region
          %s293 = ssub.s32 16, 16
          %294 = vsyncadd [#allocation10], %s293
          %s296 = sshll.u32 [#allocation11], 4
          %s297 = int_to_ptr.vmem [resolvable:$true] %s296
          %299 = dma.hbm_to_vmem [thread:$0]  %s4, 16, %s297, [#allocation10]
        $region28: #{tpu_custom_call.1} parent=11 // pred_fallthru
          _
        // Predicated region
        $region29: #{tpu_custom_call.1} parent=11 // pred_check
          %p300 = pneg %p169
        $region30: #{tpu_custom_call.1} parent=11 // pred_check_branch
          %302 = sbr.rel (%p300) target = $region32
        $region31: #{tpu_custom_call.1} parent=11 // pred_region
          %s304 = ssub.s32 16, 16
          %305 = vsyncadd [#allocation13], %s304
          %s307 = sshll.u32 [#allocation12], 4
          %s308 = int_to_ptr.vmem [resolvable:$true] %s307
          %310 = dma.hbm_to_vmem [thread:$0]  %s5, 16, %s308, [#allocation13]
        $region32: #{tpu_custom_call.1} parent=11 // pred_fallthru
          _
        // Predicated region
        $region33: #{tpu_custom_call.1} parent=11 // pred_check
          %p311 = pneg %p190
        $region34: #{tpu_custom_call.1} parent=11 // pred_check_branch
          %313 = sbr.rel (%p311) target = $region36
        $region35: #{tpu_custom_call.1} parent=11 // pred_region
          %s315 = ssub.s32 16, 16
          %316 = vsyncadd [#allocation13], %s315
          %s318 = sshll.u32 [#allocation14], 4
          %s319 = int_to_ptr.vmem [resolvable:$true] %s318
          %321 = dma.hbm_to_vmem [thread:$0]  %s6, 16, %s319, [#allocation13]
        $region36: #{tpu_custom_call.1} parent=11 // pred_fallthru
          _
        // Predicated region
        $region37: #{tpu_custom_call.1} parent=11 // pred_check
          %p322 = pneg %p211
        $region38: #{tpu_custom_call.1} parent=11 // pred_check_branch
          %324 = sbr.rel (%p322) target = $region40
        $region39: #{tpu_custom_call.1} parent=11 // pred_region
          %s326 = ssub.s32 512, 512
          %327 = vsyncadd [#allocation16], %s326
          %s328 = sshll.u32 [#allocation15], 4
          %s329 = int_to_ptr.vmem [resolvable:$true] %s328
          %334 = dma.hbm_to_vmem [thread:$0]  %s7, 512, %s329, [#allocation16], 128, 128, 8
        $region40: #{tpu_custom_call.1} parent=11 // pred_fallthru
          _
      $region12: #{tpu_custom_call.1} parent=5 // pred_fallthru
        _
      %p335 = scmp.lt.s32.totalorder %s24, 4
      // Predicated region
      $region41: #{tpu_custom_call.1} parent=5 // pred_check
        %p336 = pneg %p335
      $region42: #{tpu_custom_call.1} parent=5 // pred_check_branch
        %338 = sbr.rel (%p336) target = $region44
      $region43: #{tpu_custom_call.1} parent=5 // pred_region
        // Predicated region
        $region45: #{tpu_custom_call.1} parent=43 // pred_check
          %p339 = pneg %p58
        $region46: #{tpu_custom_call.1} parent=43 // pred_check_branch
          %341 = sbr.rel (%p339) target = $region48
        $region47: #{tpu_custom_call.1} parent=43 // pred_region
          %s342 = sand.u32 %s48, 1
          %s343 = scalar_lea.sflag [#allocation4], %s342
          %s344 = sand.u32 %s48, 1
          %s345 = smul.addr %s344, 8
          %s346 = scalar_lea.vmem [#allocation3], %s345
          %s348 = ssub.s32 128, 128
          %349 = vsyncadd %s343, %s348
          %s350 = smul.addr %s31, 2
          %s351 = sadd.s32 %s32, %s350
          %s352 = smul.addr %s351, 128
          %s353 = scalar_lea.hbm %s0, %s352
          %s355 = sshll.u32 %s346, 4
          %s356 = int_to_ptr.vmem [resolvable:$true] %s355
          %358 = dma.hbm_to_vmem [thread:$0]  %s353, 128, %s356, %s343
        $region48: #{tpu_custom_call.1} parent=43 // pred_fallthru
          _
      $region44: #{tpu_custom_call.1} parent=5 // pred_fallthru
        _
      %p359 = scmp.le.s32.totalorder 1, %s24
      %p360 = scmp.lt.s32.totalorder %s24, 5
      %p361 = pnand %p359, %p360
      %p362 = pneg %p361
      // Predicated region
      $region49: #{tpu_custom_call.1} parent=5 // pred_check
        _
      $region50: #{tpu_custom_call.1} parent=5 // pred_check_branch
        %364 = sbr.rel (%p361) target = $region52
      $region51: #{tpu_custom_call.1} parent=5 // pred_region
        %s365 = ssub.s32 %s24, 1
        %s366 = sand.u32 %s51, 1
        %s367 = scalar_lea.sflag [#allocation4], %s366
        %s368 = sand.u32 %s51, 1
        %s369 = smul.addr %s368, 8
        %s370 = scalar_lea.vmem [#allocation3], %s369
        // Predicated region
        $region53: #{tpu_custom_call.1} parent=51 // pred_check
          %p371 = pneg %p64
        $region54: #{tpu_custom_call.1} parent=51 // pred_check_branch
          %373 = sbr.rel (%p371) target = $region56
        $region55: #{tpu_custom_call.1} parent=51 // pred_region
          %374 = dma.done %s367, 128
        $region56: #{tpu_custom_call.1} parent=51 // pred_fallthru
          _
        // Predicated region
        $region57: #{tpu_custom_call.1} parent=51 // pred_check
          %p375 = pneg %p85
        $region58: #{tpu_custom_call.1} parent=51 // pred_check_branch
          %377 = sbr.rel (%p375) target = $region60
        $region59: #{tpu_custom_call.1} parent=51 // pred_region
          %378 = dma.done [#allocation7], 512
        $region60: #{tpu_custom_call.1} parent=51 // pred_fallthru
          _
        // Predicated region
        $region61: #{tpu_custom_call.1} parent=51 // pred_check
          %p379 = pneg %p106
        $region62: #{tpu_custom_call.1} parent=51 // pred_check_branch
          %381 = sbr.rel (%p379) target = $region64
        $region63: #{tpu_custom_call.1} parent=51 // pred_region
          %382 = dma.done [#allocation7], 512
        $region64: #{tpu_custom_call.1} parent=51 // pred_fallthru
          _
        // Predicated region
        $region65: #{tpu_custom_call.1} parent=51 // pred_check
          %p383 = pneg %p127
        $region66: #{tpu_custom_call.1} parent=51 // pred_check_branch
          %385 = sbr.rel (%p383) target = $region68
        $region67: #{tpu_custom_call.1} parent=51 // pred_region
          %386 = dma.done [#allocation10], 16
        $region68: #{tpu_custom_call.1} parent=51 // pred_fallthru
          _
        // Predicated region
        $region69: #{tpu_custom_call.1} parent=51 // pred_check
          %p387 = pneg %p148
        $region70: #{tpu_custom_call.1} parent=51 // pred_check_branch
          %389 = sbr.rel (%p387) target = $region72
        $region71: #{tpu_custom_call.1} parent=51 // pred_region
          %390 = dma.done [#allocation10], 16
        $region72: #{tpu_custom_call.1} parent=51 // pred_fallthru
          _
        // Predicated region
        $region73: #{tpu_custom_call.1} parent=51 // pred_check
          %p391 = pneg %p169
        $region74: #{tpu_custom_call.1} parent=51 // pred_check_branch
          %393 = sbr.rel (%p391) target = $region76
        $region75: #{tpu_custom_call.1} parent=51 // pred_region
          %394 = dma.done [#allocation13], 16
        $region76: #{tpu_custom_call.1} parent=51 // pred_fallthru
          _
        // Predicated region
        $region77: #{tpu_custom_call.1} parent=51 // pred_check
          %p395 = pneg %p190
        $region78: #{tpu_custom_call.1} parent=51 // pred_check_branch
          %397 = sbr.rel (%p395) target = $region80
        $region79: #{tpu_custom_call.1} parent=51 // pred_region
          %398 = dma.done [#allocation13], 16
        $region80: #{tpu_custom_call.1} parent=51 // pred_fallthru
          _
        // Predicated region
        $region81: #{tpu_custom_call.1} parent=51 // pred_check
          %p399 = pneg %p211
        $region82: #{tpu_custom_call.1} parent=51 // pred_check_branch
          %401 = sbr.rel (%p399) target = $region84
        $region83: #{tpu_custom_call.1} parent=51 // pred_region
          %402 = dma.done [#allocation16], 512
        $region84: #{tpu_custom_call.1} parent=51 // pred_fallthru
          _
        %s403 = sand.u32 %s51, 1
        %s404 = scalar_lea.sflag [#allocation4], %s403
        %s405 = sand.u32 %s51, 1
        %s406 = smul.addr %s405, 8
        %s407 = scalar_lea.vmem [#allocation3], %s406
        %p408 = pneg %p64
        %p409 = pneg %p61
        %p410 = pneg %p85
        %p411 = pneg %p82
        %p412 = pneg %p106
        %p413 = pneg %p103
        %p414 = pneg %p127
        %p415 = pneg %p124
        %p416 = pneg %p148
        %p417 = pneg %p145
        %p418 = pneg %p169
        %p419 = pneg %p166
        %p420 = pneg %p190
        %p421 = pneg %p187
        %p422 = pneg %p211
        %p423 = pneg %p208
        %p424 = pneg %p237
        %p425 = pneg %p234
        %s426 = sand.u32 %s224, 1
        %s427 = scalar_lea.sflag [#allocation5], %s426
        %s428 = sand.u32 %s224, 1
        %s429 = smul.addr %s428, 32
        %s430 = scalar_lea.vmem [#allocation17], %s429
        %v431 = vld [vmem:[%s370] sm:$0xff]
        %v432 = vld [vmem:[#allocation6] sm:$0xff]
        %v433 = vld [vmem:[#allocation6 + $0x8] sm:$0xff]
        %v434 = vld [vmem:[#allocation6 + $0x10] sm:$0xff]
        %v435 = vld [vmem:[#allocation6 + $0x18] sm:$0xff]
        %vm436 = vcmask 261120
        %v438 = vsel %vm436, %v431, 0
        %440 = vmatprep.subr.mxu0 0.0
        %441 = vmatpush1.msra.mxu0 %v432
        %442 = vmatprep.subr.mxu0 0.0
        %443 = vmatpush1.msra.mxu0 %v433
        %444 = vmatprep.subr.mxu0 0.0
        %445 = vmatpush1.msra.mxu0 %v434
        %446 = vmatprep.subr.mxu0 0.0
        %447 = vmatpush1.msra.mxu0 %v435
        %448 = vmatprep.subr.mxu0 0.0
        %449 = vmatpush1.msra.mxu0 0.0
        %450 = vmatprep.subr.mxu0 0.0
        %451 = vmatpush1.msra.mxu0 0.0
        %452 = vmatprep.subr.mxu0 0.0
        %453 = vmatpush1.msra.mxu0 0.0
        %454 = vmatprep.subr.mxu0 0.0
        %455 = vmatpush1.msra.mxu0 0.0
        %456 = vmatprep.subr.mxu0 0.0
        %457 = vmatpush1.msra.mxu0 0.0
        %458 = vmatprep.subr.mxu0 0.0
        %459 = vmatpush1.msra.mxu0 0.0
        %460 = vmatprep.subr.mxu0 0.0
        %461 = vmatpush1.msra.mxu0 0.0
        %462 = vmatprep.subr.mxu0 0.0
        %463 = vmatpush1.msra.mxu0 0.0
        %464 = vmatprep.subr.mxu0 0.0
        %465 = vmatpush1.msra.mxu0 0.0
        %466 = vmatprep.subr.mxu0 0.0
        %467 = vmatpush1.msra.mxu0 0.0
        %468 = vmatprep.subr.mxu0 0.0
        %469 = vmatpush1.msra.mxu0 0.0
        %470 = vmatprep.subr.mxu0 0.0
        %471 = vmatpush1.msra.mxu0 0.0
        %472 = vmatprep.subr.mxu0 0.0
        %473 = vmatpush1.msra.mxu0 0.0
        %474 = vmatprep.subr.mxu0 0.0
        %475 = vmatpush1.msra.mxu0 0.0
        %476 = vmatprep.subr.mxu0 0.0
        %477 = vmatpush1.msra.mxu0 0.0
        %478 = vmatprep.subr.mxu0 0.0
        %479 = vmatpush1.msra.mxu0 0.0
        %480 = vmatprep.subr.mxu0 0.0
        %481 = vmatpush1.msra.mxu0 0.0
        %482 = vmatprep.subr.mxu0 0.0
        %483 = vmatpush1.msra.mxu0 0.0
        %484 = vmatprep.subr.mxu0 0.0
        %485 = vmatpush1.msra.mxu0 0.0
        %486 = vmatprep.subr.mxu0 0.0
        %487 = vmatpush1.msra.mxu0 0.0
        %488 = vmatprep.subr.mxu0 0.0
        %489 = vmatpush1.msra.mxu0 0.0
        %490 = vmatprep.subr.mxu0 0.0
        %491 = vmatpush1.msra.mxu0 0.0
        %492 = vmatprep.subr.mxu0 0.0
        %493 = vmatpush1.msra.mxu0 0.0
        %494 = vmatprep.subr.mxu0 0.0
        %495 = vmatpush1.msra.mxu0 0.0
        %496 = vmatprep.subr.mxu0 0.0
        %497 = vmatpush1.msra.mxu0 0.0
        %498 = vmatprep.subr.mxu0 0.0
        %499 = vmatpush1.msra.mxu0 0.0
        %500 = vmatprep.subr.mxu0 0.0
        %501 = vmatpush1.msra.mxu0 0.0
        %502 = vmatprep.subr.mxu0 0.0
        %503 = vmatpush1.msra.mxu0 0.0
        %504 = vmatprep.mubr.f32.mxu0 0.0
        %505 = vmatmul.mubr.f32.gmra.mrb[0].mxu0 %v438
        %v506 = vpop.f32.mrb[0].mxu0
        %v507 = vadd.f32 0.0, %v506
        %v508 = vpop.f32.mrb[0].mxu0
        %509 = vdwg.mxu0
        %v510 = vld [vmem:[#allocation8] sm:$0xff]
        %v511 = vld [vmem:[#allocation8 + $0x8] sm:$0xff]
        %v512 = vld [vmem:[#allocation8 + $0x10] sm:$0xff]
        %v513 = vld [vmem:[#allocation8 + $0x18] sm:$0xff]
        %514 = vmatprep.subr.mxu0 0.0
        %515 = vmatpush1.msra.mxu0 %v510
        %516 = vmatprep.subr.mxu0 0.0
        %517 = vmatpush1.msra.mxu0 %v511
        %518 = vmatprep.subr.mxu0 0.0
        %519 = vmatpush1.msra.mxu0 %v512
        %520 = vmatprep.subr.mxu0 0.0
        %521 = vmatpush1.msra.mxu0 %v513
        %522 = vmatprep.subr.mxu0 0.0
        %523 = vmatpush1.msra.mxu0 0.0
        %524 = vmatprep.subr.mxu0 0.0
        %525 = vmatpush1.msra.mxu0 0.0
        %526 = vmatprep.subr.mxu0 0.0
        %527 = vmatpush1.msra.mxu0 0.0
        %528 = vmatprep.subr.mxu0 0.0
        %529 = vmatpush1.msra.mxu0 0.0
        %530 = vmatprep.subr.mxu0 0.0
        %531 = vmatpush1.msra.mxu0 0.0
        %532 = vmatprep.subr.mxu0 0.0
        %533 = vmatpush1.msra.mxu0 0.0
        %534 = vmatprep.subr.mxu0 0.0
        %535 = vmatpush1.msra.mxu0 0.0
        %536 = vmatprep.subr.mxu0 0.0
        %537 = vmatpush1.msra.mxu0 0.0
        %538 = vmatprep.subr.mxu0 0.0
        %539 = vmatpush1.msra.mxu0 0.0
        %540 = vmatprep.subr.mxu0 0.0
        %541 = vmatpush1.msra.mxu0 0.0
        %542 = vmatprep.subr.mxu0 0.0
        %543 = vmatpush1.msra.mxu0 0.0
        %544 = vmatprep.subr.mxu0 0.0
        %545 = vmatpush1.msra.mxu0 0.0
        %546 = vmatprep.subr.mxu0 0.0
        %547 = vmatpush1.msra.mxu0 0.0
        %548 = vmatprep.subr.mxu0 0.0
        %549 = vmatpush1.msra.mxu0 0.0
        %550 = vmatprep.subr.mxu0 0.0
        %551 = vmatpush1.msra.mxu0 0.0
        %552 = vmatprep.subr.mxu0 0.0
        %553 = vmatpush1.msra.mxu0 0.0
        %554 = vmatprep.subr.mxu0 0.0
        %555 = vmatpush1.msra.mxu0 0.0
        %556 = vmatprep.subr.mxu0 0.0
        %557 = vmatpush1.msra.mxu0 0.0
        %558 = vmatprep.subr.mxu0 0.0
        %559 = vmatpush1.msra.mxu0 0.0
        %560 = vmatprep.subr.mxu0 0.0
        %561 = vmatpush1.msra.mxu0 0.0
        %562 = vmatprep.subr.mxu0 0.0
        %563 = vmatpush1.msra.mxu0 0.0
        %564 = vmatprep.subr.mxu0 0.0
        %565 = vmatpush1.msra.mxu0 0.0
        %566 = vmatprep.subr.mxu0 0.0
        %567 = vmatpush1.msra.mxu0 0.0
        %568 = vmatprep.subr.mxu0 0.0
        %569 = vmatpush1.msra.mxu0 0.0
        %570 = vmatprep.subr.mxu0 0.0
        %571 = vmatpush1.msra.mxu0 0.0
        %572 = vmatprep.subr.mxu0 0.0
        %573 = vmatpush1.msra.mxu0 0.0
        %574 = vmatprep.subr.mxu0 0.0
        %575 = vmatpush1.msra.mxu0 0.0
        %576 = vmatprep.subr.mxu0 0.0
        %577 = vmatpush1.msra.mxu0 0.0
        %578 = vmatprep.mubr.f32.mxu0 0.0
        %579 = vmatmul.mubr.f32.gmra.mrb[0].mxu0 %v438
        %v580 = vpop.f32.mrb[0].mxu0
        %v581 = vadd.f32 0.0, %v580
        %v582 = vpop.f32.mrb[0].mxu0
        %583 = vdwg.mxu0
        %v584 = vld [vmem:[#allocation15] sm:$0xff]
        %v585 = vld [vmem:[#allocation15 + $0x8] sm:$0xff]
        %v586 = vld [vmem:[#allocation15 + $0x10] sm:$0xff]
        %v587 = vld [vmem:[#allocation15 + $0x18] sm:$0xff]
        %v588 = vld [vmem:[#allocation9] sm:$0x1]
        %v589 = vld [vmem:[#allocation11] sm:$0x1]
        %v591 = vsel %vm436, %v507, 0
        %593 = vmatprep.subr.mxu0 0.0
        %594 = vmatpush1.msra.mxu0 %v584
        %595 = vmatprep.subr.mxu0 0.0
        %596 = vmatpush1.msra.mxu0 %v585
        %597 = vmatprep.subr.mxu0 0.0
        %598 = vmatpush1.msra.mxu0 %v586
        %599 = vmatprep.subr.mxu0 0.0
        %600 = vmatpush1.msra.mxu0 %v587
        %601 = vmatprep.subr.mxu0 0.0
        %602 = vmatpush1.msra.mxu0 0.0
        %603 = vmatprep.subr.mxu0 0.0
        %604 = vmatpush1.msra.mxu0 0.0
        %605 = vmatprep.subr.mxu0 0.0
        %606 = vmatpush1.msra.mxu0 0.0
        %607 = vmatprep.subr.mxu0 0.0
        %608 = vmatpush1.msra.mxu0 0.0
        %609 = vmatprep.subr.mxu0 0.0
        %610 = vmatpush1.msra.mxu0 0.0
        %611 = vmatprep.subr.mxu0 0.0
        %612 = vmatpush1.msra.mxu0 0.0
        %613 = vmatprep.subr.mxu0 0.0
        %614 = vmatpush1.msra.mxu0 0.0
        %615 = vmatprep.subr.mxu0 0.0
        %616 = vmatpush1.msra.mxu0 0.0
        %617 = vmatprep.subr.mxu0 0.0
        %618 = vmatpush1.msra.mxu0 0.0
        %619 = vmatprep.subr.mxu0 0.0
        %620 = vmatpush1.msra.mxu0 0.0
        %621 = vmatprep.subr.mxu0 0.0
        %622 = vmatpush1.msra.mxu0 0.0
        %623 = vmatprep.subr.mxu0 0.0
        %624 = vmatpush1.msra.mxu0 0.0
        %625 = vmatprep.subr.mxu0 0.0
        %626 = vmatpush1.msra.mxu0 0.0
        %627 = vmatprep.subr.mxu0 0.0
        %628 = vmatpush1.msra.mxu0 0.0
        %629 = vmatprep.subr.mxu0 0.0
        %630 = vmatpush1.msra.mxu0 0.0
        %631 = vmatprep.subr.mxu0 0.0
        %632 = vmatpush1.msra.mxu0 0.0
        %633 = vmatprep.subr.mxu0 0.0
        %634 = vmatpush1.msra.mxu0 0.0
        %635 = vmatprep.subr.mxu0 0.0
        %636 = vmatpush1.msra.mxu0 0.0
        %637 = vmatprep.subr.mxu0 0.0
        %638 = vmatpush1.msra.mxu0 0.0
        %639 = vmatprep.subr.mxu0 0.0
        %640 = vmatpush1.msra.mxu0 0.0
        %641 = vmatprep.subr.mxu0 0.0
        %642 = vmatpush1.msra.mxu0 0.0
        %643 = vmatprep.subr.mxu0 0.0
        %644 = vmatpush1.msra.mxu0 0.0
        %645 = vmatprep.subr.mxu0 0.0
        %646 = vmatpush1.msra.mxu0 0.0
        %647 = vmatprep.subr.mxu0 0.0
        %648 = vmatpush1.msra.mxu0 0.0
        %649 = vmatprep.subr.mxu0 0.0
        %650 = vmatpush1.msra.mxu0 0.0
        %651 = vmatprep.subr.mxu0 0.0
        %652 = vmatpush1.msra.mxu0 0.0
        %653 = vmatprep.subr.mxu0 0.0
        %654 = vmatpush1.msra.mxu0 0.0
        %655 = vmatprep.subr.mxu0 0.0
        %656 = vmatpush1.msra.mxu0 0.0
        %657 = vmatprep.mubr.f32.mxu0 0.0
        %658 = vmatmul.mubr.f32.gmra.mrb[0].mxu0 %v591
        %v659 = vpop.f32.mrb[0].mxu0
        %v660 = vadd.f32 0.0, %v659
        %v661 = vpop.f32.mrb[0].mxu0
        %662 = vdwg.mxu0
        %v663 = vmul.f32 %v507, %v507
        %v665 = vsel %vm436, %v663, 0
        %667 = vmatprep.subr.mxu0 0.0
        %668 = vmatpush1.msra.mxu0 %v584
        %669 = vmatprep.subr.mxu0 0.0
        %670 = vmatpush1.msra.mxu0 %v585
        %671 = vmatprep.subr.mxu0 0.0
        %672 = vmatpush1.msra.mxu0 %v586
        %673 = vmatprep.subr.mxu0 0.0
        %674 = vmatpush1.msra.mxu0 %v587
        %675 = vmatprep.subr.mxu0 0.0
        %676 = vmatpush1.msra.mxu0 0.0
        %677 = vmatprep.subr.mxu0 0.0
        %678 = vmatpush1.msra.mxu0 0.0
        %679 = vmatprep.subr.mxu0 0.0
        %680 = vmatpush1.msra.mxu0 0.0
        %681 = vmatprep.subr.mxu0 0.0
        %682 = vmatpush1.msra.mxu0 0.0
        %683 = vmatprep.subr.mxu0 0.0
        %684 = vmatpush1.msra.mxu0 0.0
        %685 = vmatprep.subr.mxu0 0.0
        %686 = vmatpush1.msra.mxu0 0.0
        %687 = vmatprep.subr.mxu0 0.0
        %688 = vmatpush1.msra.mxu0 0.0
        %689 = vmatprep.subr.mxu0 0.0
        %690 = vmatpush1.msra.mxu0 0.0
        %691 = vmatprep.subr.mxu0 0.0
        %692 = vmatpush1.msra.mxu0 0.0
        %693 = vmatprep.subr.mxu0 0.0
        %694 = vmatpush1.msra.mxu0 0.0
        %695 = vmatprep.subr.mxu0 0.0
        %696 = vmatpush1.msra.mxu0 0.0
        %697 = vmatprep.subr.mxu0 0.0
        %698 = vmatpush1.msra.mxu0 0.0
        %699 = vmatprep.subr.mxu0 0.0
        %700 = vmatpush1.msra.mxu0 0.0
        %701 = vmatprep.subr.mxu0 0.0
        %702 = vmatpush1.msra.mxu0 0.0
        %703 = vmatprep.subr.mxu0 0.0
        %704 = vmatpush1.msra.mxu0 0.0
        %705 = vmatprep.subr.mxu0 0.0
        %706 = vmatpush1.msra.mxu0 0.0
        %707 = vmatprep.subr.mxu0 0.0
        %708 = vmatpush1.msra.mxu0 0.0
        %709 = vmatprep.subr.mxu0 0.0
        %710 = vmatpush1.msra.mxu0 0.0
        %711 = vmatprep.subr.mxu0 0.0
        %712 = vmatpush1.msra.mxu0 0.0
        %713 = vmatprep.subr.mxu0 0.0
        %714 = vmatpush1.msra.mxu0 0.0
        %715 = vmatprep.subr.mxu0 0.0
        %716 = vmatpush1.msra.mxu0 0.0
        %717 = vmatprep.subr.mxu0 0.0
        %718 = vmatpush1.msra.mxu0 0.0
        %719 = vmatprep.subr.mxu0 0.0
        %720 = vmatpush1.msra.mxu0 0.0
        %721 = vmatprep.subr.mxu0 0.0
        %722 = vmatpush1.msra.mxu0 0.0
        %723 = vmatprep.subr.mxu0 0.0
        %724 = vmatpush1.msra.mxu0 0.0
        %725 = vmatprep.subr.mxu0 0.0
        %726 = vmatpush1.msra.mxu0 0.0
        %727 = vmatprep.subr.mxu0 0.0
        %728 = vmatpush1.msra.mxu0 0.0
        %729 = vmatprep.subr.mxu0 0.0
        %730 = vmatpush1.msra.mxu0 0.0
        %731 = vmatprep.mubr.f32.mxu0 0.0
        %732 = vmatmul.mubr.f32.gmra.mrb[0].mxu0 %v665
        %v733 = vpop.f32.mrb[0].mxu0
        %v734 = vadd.f32 0.0, %v733
        %v735 = vpop.f32.mrb[0].mxu0
        %736 = vdwg.mxu0
        %v737 = vmul.f32 %v660, %v660
        %v738 = vsub.f32 %v734, %v737
        %v739 = vmax.f32 %v738, 0.0
        %v740 = vsub.f32 %v507, %v660
        %v741 = vadd.f32 %v739, 1e-05
        %v742 = vrsqrt.pop %v741
        %v743 = vmul.f32 %v740, %v742
        %v745 = vlaneseq
        %v746 = vshrl.u32 %v745, 7
        %v747 = vsub.s32 0, %v746
        %v748 = vrot.slane %v588, %v747
        %v750 = vmul.f32 %v743, %v748
        %v752 = vlaneseq
        %v753 = vshrl.u32 %v752, 7
        %v754 = vsub.s32 0, %v753
        %v755 = vrot.slane %v589, %v754
        %v757 = vadd.f32 %v750, %v755
        %v758 = vld [vmem:[#allocation12] sm:$0x1]
        %v759 = vld [vmem:[#allocation14] sm:$0x1]
        %v761 = vsel %vm436, %v581, 0
        %763 = vmatprep.subr.mxu0 0.0
        %764 = vmatpush1.msra.mxu0 %v584
        %765 = vmatprep.subr.mxu0 0.0
        %766 = vmatpush1.msra.mxu0 %v585
        %767 = vmatprep.subr.mxu0 0.0
        %768 = vmatpush1.msra.mxu0 %v586
        %769 = vmatprep.subr.mxu0 0.0
        %770 = vmatpush1.msra.mxu0 %v587
        %771 = vmatprep.subr.mxu0 0.0
        %772 = vmatpush1.msra.mxu0 0.0
        %773 = vmatprep.subr.mxu0 0.0
        %774 = vmatpush1.msra.mxu0 0.0
        %775 = vmatprep.subr.mxu0 0.0
        %776 = vmatpush1.msra.mxu0 0.0
        %777 = vmatprep.subr.mxu0 0.0
        %778 = vmatpush1.msra.mxu0 0.0
        %779 = vmatprep.subr.mxu0 0.0
        %780 = vmatpush1.msra.mxu0 0.0
        %781 = vmatprep.subr.mxu0 0.0
        %782 = vmatpush1.msra.mxu0 0.0
        %783 = vmatprep.subr.mxu0 0.0
        %784 = vmatpush1.msra.mxu0 0.0
        %785 = vmatprep.subr.mxu0 0.0
        %786 = vmatpush1.msra.mxu0 0.0
        %787 = vmatprep.subr.mxu0 0.0
        %788 = vmatpush1.msra.mxu0 0.0
        %789 = vmatprep.subr.mxu0 0.0
        %790 = vmatpush1.msra.mxu0 0.0
        %791 = vmatprep.subr.mxu0 0.0
        %792 = vmatpush1.msra.mxu0 0.0
        %793 = vmatprep.subr.mxu0 0.0
        %794 = vmatpush1.msra.mxu0 0.0
        %795 = vmatprep.subr.mxu0 0.0
        %796 = vmatpush1.msra.mxu0 0.0
        %797 = vmatprep.subr.mxu0 0.0
        %798 = vmatpush1.msra.mxu0 0.0
        %799 = vmatprep.subr.mxu0 0.0
        %800 = vmatpush1.msra.mxu0 0.0
        %801 = vmatprep.subr.mxu0 0.0
        %802 = vmatpush1.msra.mxu0 0.0
        %803 = vmatprep.subr.mxu0 0.0
        %804 = vmatpush1.msra.mxu0 0.0
        %805 = vmatprep.subr.mxu0 0.0
        %806 = vmatpush1.msra.mxu0 0.0
        %807 = vmatprep.subr.mxu0 0.0
        %808 = vmatpush1.msra.mxu0 0.0
        %809 = vmatprep.subr.mxu0 0.0
        %810 = vmatpush1.msra.mxu0 0.0
        %811 = vmatprep.subr.mxu0 0.0
        %812 = vmatpush1.msra.mxu0 0.0
        %813 = vmatprep.subr.mxu0 0.0
        %814 = vmatpush1.msra.mxu0 0.0
        %815 = vmatprep.subr.mxu0 0.0
        %816 = vmatpush1.msra.mxu0 0.0
        %817 = vmatprep.subr.mxu0 0.0
        %818 = vmatpush1.msra.mxu0 0.0
        %819 = vmatprep.subr.mxu0 0.0
        %820 = vmatpush1.msra.mxu0 0.0
        %821 = vmatprep.subr.mxu0 0.0
        %822 = vmatpush1.msra.mxu0 0.0
        %823 = vmatprep.subr.mxu0 0.0
        %824 = vmatpush1.msra.mxu0 0.0
        %825 = vmatprep.subr.mxu0 0.0
        %826 = vmatpush1.msra.mxu0 0.0
        %827 = vmatprep.mubr.f32.mxu0 0.0
        %828 = vmatmul.mubr.f32.gmra.mrb[0].mxu0 %v761
        %v829 = vpop.f32.mrb[0].mxu0
        %v830 = vadd.f32 0.0, %v829
        %v831 = vpop.f32.mrb[0].mxu0
        %832 = vdwg.mxu0
        %v833 = vmul.f32 %v581, %v581
        %v835 = vsel %vm436, %v833, 0
        %837 = vmatprep.subr.mxu0 0.0
        %838 = vmatpush1.msra.mxu0 %v584
        %839 = vmatprep.subr.mxu0 0.0
        %840 = vmatpush1.msra.mxu0 %v585
        %841 = vmatprep.subr.mxu0 0.0
        %842 = vmatpush1.msra.mxu0 %v586
        %843 = vmatprep.subr.mxu0 0.0
        %844 = vmatpush1.msra.mxu0 %v587
        %845 = vmatprep.subr.mxu0 0.0
        %846 = vmatpush1.msra.mxu0 0.0
        %847 = vmatprep.subr.mxu0 0.0
        %848 = vmatpush1.msra.mxu0 0.0
        %849 = vmatprep.subr.mxu0 0.0
        %850 = vmatpush1.msra.mxu0 0.0
        %851 = vmatprep.subr.mxu0 0.0
        %852 = vmatpush1.msra.mxu0 0.0
        %853 = vmatprep.subr.mxu0 0.0
        %854 = vmatpush1.msra.mxu0 0.0
        %855 = vmatprep.subr.mxu0 0.0
        %856 = vmatpush1.msra.mxu0 0.0
        %857 = vmatprep.subr.mxu0 0.0
        %858 = vmatpush1.msra.mxu0 0.0
        %859 = vmatprep.subr.mxu0 0.0
        %860 = vmatpush1.msra.mxu0 0.0
        %861 = vmatprep.subr.mxu0 0.0
        %862 = vmatpush1.msra.mxu0 0.0
        %863 = vmatprep.subr.mxu0 0.0
        %864 = vmatpush1.msra.mxu0 0.0
        %865 = vmatprep.subr.mxu0 0.0
        %866 = vmatpush1.msra.mxu0 0.0
        %867 = vmatprep.subr.mxu0 0.0
        %868 = vmatpush1.msra.mxu0 0.0
        %869 = vmatprep.subr.mxu0 0.0
        %870 = vmatpush1.msra.mxu0 0.0
        %871 = vmatprep.subr.mxu0 0.0
        %872 = vmatpush1.msra.mxu0 0.0
        %873 = vmatprep.subr.mxu0 0.0
        %874 = vmatpush1.msra.mxu0 0.0
        %875 = vmatprep.subr.mxu0 0.0
        %876 = vmatpush1.msra.mxu0 0.0
        %877 = vmatprep.subr.mxu0 0.0
        %878 = vmatpush1.msra.mxu0 0.0
        %879 = vmatprep.subr.mxu0 0.0
        %880 = vmatpush1.msra.mxu0 0.0
        %881 = vmatprep.subr.mxu0 0.0
        %882 = vmatpush1.msra.mxu0 0.0
        %883 = vmatprep.subr.mxu0 0.0
        %884 = vmatpush1.msra.mxu0 0.0
        %885 = vmatprep.subr.mxu0 0.0
        %886 = vmatpush1.msra.mxu0 0.0
        %887 = vmatprep.subr.mxu0 0.0
        %888 = vmatpush1.msra.mxu0 0.0
        %889 = vmatprep.subr.mxu0 0.0
        %890 = vmatpush1.msra.mxu0 0.0
        %891 = vmatprep.subr.mxu0 0.0
        %892 = vmatpush1.msra.mxu0 0.0
        %893 = vmatprep.subr.mxu0 0.0
        %894 = vmatpush1.msra.mxu0 0.0
        %895 = vmatprep.subr.mxu0 0.0
        %896 = vmatpush1.msra.mxu0 0.0
        %897 = vmatprep.subr.mxu0 0.0
        %898 = vmatpush1.msra.mxu0 0.0
        %899 = vmatprep.subr.mxu0 0.0
        %900 = vmatpush1.msra.mxu0 0.0
        %901 = vmatprep.mubr.f32.mxu0 0.0
        %902 = vmatmul.mubr.f32.gmra.mrb[0].mxu0 %v835
        %v903 = vpop.f32.mrb[0].mxu0
        %v904 = vadd.f32 0.0, %v903
        %v905 = vpop.f32.mrb[0].mxu0
        %906 = vdwg.mxu0
        %v907 = vmul.f32 %v830, %v830
        %v908 = vsub.f32 %v904, %v907
        %v909 = vmax.f32 %v908, 0.0
        %v910 = vsub.f32 %v581, %v830
        %v911 = vadd.f32 %v909, 1e-05
        %v912 = vrsqrt.pop %v911
        %v913 = vmul.f32 %v910, %v912
        %v915 = vlaneseq
        %v916 = vshrl.u32 %v915, 7
        %v917 = vsub.s32 0, %v916
        %v918 = vrot.slane %v758, %v917
        %v920 = vmul.f32 %v913, %v918
        %v922 = vlaneseq
        %v923 = vshrl.u32 %v922, 7
        %v924 = vsub.s32 0, %v923
        %v925 = vrot.slane %v759, %v924
        %v927 = vadd.f32 %v920, %v925
        %928 = vxpose.xlu0.b32.start [1/16] %v757, 128
        %929 = vxpose.xlu0.b32.cont [2/16] 0.0, 128
        %930 = vxpose.xlu0.b32.cont [3/16] 0.0, 128
        %931 = vxpose.xlu0.b32.cont [4/16] 0.0, 128
        %932 = vxpose.xlu0.b32.cont [5/16] 0.0, 128
        %933 = vxpose.xlu0.b32.cont [6/16] 0.0, 128
        %934 = vxpose.xlu0.b32.cont [7/16] 0.0, 128
        %935 = vxpose.xlu0.b32.cont [8/16] 0.0, 128
        %936 = vxpose.xlu0.b32.cont [9/16] 0.0, 128
        %937 = vxpose.xlu0.b32.cont [10/16] 0.0, 128
        %938 = vxpose.xlu0.b32.cont [11/16] 0.0, 128
        %939 = vxpose.xlu0.b32.cont [12/16] 0.0, 128
        %940 = vxpose.xlu0.b32.cont [13/16] 0.0, 128
        %941 = vxpose.xlu0.b32.cont [14/16] 0.0, 128
        %942 = vxpose.xlu0.b32.cont [15/16] 0.0, 128
        %943 = vxpose.xlu0.b32.end [16/16] 0.0, 128
        %v944 = vpop.trf.xlu0
        %v945 = vpop.trf.xlu0
        %v946 = vpop.trf.xlu0
        %v947 = vpop.trf.xlu0
        %v948 = vpop.trf.xlu0
        %v949 = vpop.trf.xlu0
        %v950 = vpop.trf.xlu0
        %v951 = vpop.trf.xlu0
        %v952 = vpop.trf.xlu0
        %v953 = vpop.trf.xlu0
        %v954 = vpop.trf.xlu0
        %v955 = vpop.trf.xlu0
        %v956 = vpop.trf.xlu0
        %v957 = vpop.trf.xlu0
        %v958 = vpop.trf.xlu0
        %v959 = vpop.trf.xlu0
        %vm960 = vcmask 64512
        %v962 = vsel %vm960, %v944, 0
        %v965 = vsel %vm960, %v945, 0
        %v968 = vsel %vm960, %v946, 0
        %v971 = vsel %vm960, %v947, 0
        %973 = vmatprep.subr.mxu0 0.0
        %974 = vmatpush1.msra.mxu0 %v927
        %975 = vmatprep.subr.mxu0 0.0
        %976 = vmatpush1.msra.mxu0 0.0
        %977 = vmatprep.subr.mxu0 0.0
        %978 = vmatpush1.msra.mxu0 0.0
        %979 = vmatprep.subr.mxu0 0.0
        %980 = vmatpush1.msra.mxu0 0.0
        %981 = vmatprep.subr.mxu0 0.0
        %982 = vmatpush1.msra.mxu0 0.0
        %983 = vmatprep.subr.mxu0 0.0
        %984 = vmatpush1.msra.mxu0 0.0
        %985 = vmatprep.subr.mxu0 0.0
        %986 = vmatpush1.msra.mxu0 0.0
        %987 = vmatprep.subr.mxu0 0.0
        %988 = vmatpush1.msra.mxu0 0.0
        %989 = vmatprep.subr.mxu0 0.0
        %990 = vmatpush1.msra.mxu0 0.0
        %991 = vmatprep.subr.mxu0 0.0
        %992 = vmatpush1.msra.mxu0 0.0
        %993 = vmatprep.subr.mxu0 0.0
        %994 = vmatpush1.msra.mxu0 0.0
        %995 = vmatprep.subr.mxu0 0.0
        %996 = vmatpush1.msra.mxu0 0.0
        %997 = vmatprep.subr.mxu0 0.0
        %998 = vmatpush1.msra.mxu0 0.0
        %999 = vmatprep.subr.mxu0 0.0
        %1000 = vmatpush1.msra.mxu0 0.0
        %1001 = vmatprep.subr.mxu0 0.0
        %1002 = vmatpush1.msra.mxu0 0.0
        %1003 = vmatprep.subr.mxu0 0.0
        %1004 = vmatpush1.msra.mxu0 0.0
        %1005 = vmatprep.subr.mxu0 0.0
        %1006 = vmatpush1.msra.mxu0 0.0
        %1007 = vmatprep.subr.mxu0 0.0
        %1008 = vmatpush1.msra.mxu0 0.0
        %1009 = vmatprep.subr.mxu0 0.0
        %1010 = vmatpush1.msra.mxu0 0.0
        %1011 = vmatprep.subr.mxu0 0.0
        %1012 = vmatpush1.msra.mxu0 0.0
        %1013 = vmatprep.subr.mxu0 0.0
        %1014 = vmatpush1.msra.mxu0 0.0
        %1015 = vmatprep.subr.mxu0 0.0
        %1016 = vmatpush1.msra.mxu0 0.0
        %1017 = vmatprep.subr.mxu0 0.0
        %1018 = vmatpush1.msra.mxu0 0.0
        %1019 = vmatprep.subr.mxu0 0.0
        %1020 = vmatpush1.msra.mxu0 0.0
        %1021 = vmatprep.subr.mxu0 0.0
        %1022 = vmatpush1.msra.mxu0 0.0
        %1023 = vmatprep.subr.mxu0 0.0
        %1024 = vmatpush1.msra.mxu0 0.0
        %1025 = vmatprep.subr.mxu0 0.0
        %1026 = vmatpush1.msra.mxu0 0.0
        %1027 = vmatprep.subr.mxu0 0.0
        %1028 = vmatpush1.msra.mxu0 0.0
        %1029 = vmatprep.subr.mxu0 0.0
        %1030 = vmatpush1.msra.mxu0 0.0
        %1031 = vmatprep.subr.mxu0 0.0
        %1032 = vmatpush1.msra.mxu0 0.0
        %1033 = vmatprep.subr.mxu0 0.0
        %1034 = vmatpush1.msra.mxu0 0.0
        %1035 = vmatprep.subr.mxu0 0.0
        %1036 = vmatpush1.msra.mxu0 0.0
        %1037 = vmatprep.mubr.f32.mxu0 0.0
        %1038 = vmatmul.mubr.f32.gmra.mrb[0].mxu0 %v962
        %v1039 = vpop.f32.mrb[0].mxu0
        %v1040 = vadd.f32 0.0, %v1039
        %v1041 = vpop.f32.mrb[0].mxu0
        %1042 = vmatprep.mubr.f32.mxu0 0.0
        %1043 = vmatmul.mubr.f32.gmra.mrb[0].mxu0 %v965
        %v1044 = vpop.f32.mrb[0].mxu0
        %v1045 = vadd.f32 0.0, %v1044
        %v1046 = vpop.f32.mrb[0].mxu0
        %1047 = vmatprep.mubr.f32.mxu0 0.0
        %1048 = vmatmul.mubr.f32.gmra.mrb[0].mxu0 %v968
        %v1049 = vpop.f32.mrb[0].mxu0
        %v1050 = vadd.f32 0.0, %v1049
        %v1051 = vpop.f32.mrb[0].mxu0
        %1052 = vmatprep.mubr.f32.mxu0 0.0
        %1053 = vmatmul.mubr.f32.gmra.mrb[0].mxu0 %v971
        %v1054 = vpop.f32.mrb[0].mxu0
        %v1055 = vadd.f32 0.0, %v1054
        %v1056 = vpop.f32.mrb[0].mxu0
        %1057 = vdwg.mxu0
        %p1058 = scmp.eq.s32.totalorder %s34, 0
        // Predicated region
        $region85: #{tpu_custom_call.1} parent=51 // pred_check
          %p1059 = pneg %p1058
        $region86: #{tpu_custom_call.1} parent=51 // pred_check_branch
          %1061 = sbr.rel (%p1059) target = $region88
        $region87: #{tpu_custom_call.1} parent=51 // pred_region
          %1062 = vst.msk [vmem:[#allocation2] sm:$0xff] %vm436, %v1040
          %1063 = vst.msk [vmem:[#allocation2 + $0x8] sm:$0xff] %vm436, %v1045
          %1064 = vst.msk [vmem:[#allocation2 + $0x10] sm:$0xff] %vm436, %v1050
          %1065 = vst.msk [vmem:[#allocation2 + $0x18] sm:$0xff] %vm436, %v1055
        $region88: #{tpu_custom_call.1} parent=51 // pred_fallthru
          _
        %p1066 = scmp.ne.s32.totalorder %s34, 0
        // Predicated region
        $region89: #{tpu_custom_call.1} parent=51 // pred_check
          %p1067 = pneg %p1066
        $region90: #{tpu_custom_call.1} parent=51 // pred_check_branch
          %1069 = sbr.rel (%p1067) target = $region92
        $region91: #{tpu_custom_call.1} parent=51 // pred_region
          %v1070 = vld [vmem:[#allocation2] sm:$0xff]
          %v1071 = vld [vmem:[#allocation2 + $0x8] sm:$0xff]
          %v1072 = vld [vmem:[#allocation2 + $0x10] sm:$0xff]
          %v1073 = vld [vmem:[#allocation2 + $0x18] sm:$0xff]
          %v1074 = vadd.f32 %v1070, %v1040
          %v1075 = vadd.f32 %v1071, %v1045
          %v1076 = vadd.f32 %v1072, %v1050
          %v1077 = vadd.f32 %v1073, %v1055
          %1078 = vst.msk [vmem:[#allocation2] sm:$0xff] %vm436, %v1074
          %1079 = vst.msk [vmem:[#allocation2 + $0x8] sm:$0xff] %vm436, %v1075
          %1080 = vst.msk [vmem:[#allocation2 + $0x10] sm:$0xff] %vm436, %v1076
          %1081 = vst.msk [vmem:[#allocation2 + $0x18] sm:$0xff] %vm436, %v1077
        $region92: #{tpu_custom_call.1} parent=51 // pred_fallthru
          _
        %p1082 = scmp.eq.s32.totalorder %s34, 1
        // Predicated region
        $region93: #{tpu_custom_call.1} parent=51 // pred_check
          %p1083 = pneg %p1082
        $region94: #{tpu_custom_call.1} parent=51 // pred_check_branch
          %1085 = sbr.rel (%p1083) target = $region96
        $region95: #{tpu_custom_call.1} parent=51 // pred_region
          %v1086 = vld [vmem:[#allocation15] sm:$0xff]
          %v1087 = vld [vmem:[#allocation15 + $0x8] sm:$0xff]
          %v1088 = vld [vmem:[#allocation15 + $0x10] sm:$0xff]
          %v1089 = vld [vmem:[#allocation15 + $0x18] sm:$0xff]
          %vm1090 = vcmp.ne.f32.partialorder %v1086, 0.0
          %vm1091 = vcmp.ne.f32.partialorder %v1087, 0.0
          %vm1092 = vcmp.ne.f32.partialorder %v1088, 0.0
          %vm1093 = vcmp.ne.f32.partialorder %v1089, 0.0
          %v1094 = vsel %vm1090, 0.0625, 0.0
          %v1095 = vsel %vm1091, 0.0625, 0.0
          %v1096 = vsel %vm1092, 0.0625, 0.0
          %v1097 = vsel %vm1093, 0.0625, 0.0
          %v1098 = vld [vmem:[#allocation2] sm:$0xff]
          %v1099 = vld [vmem:[#allocation2 + $0x8] sm:$0xff]
          %v1100 = vld [vmem:[#allocation2 + $0x10] sm:$0xff]
          %v1101 = vld [vmem:[#allocation2 + $0x18] sm:$0xff]
          %v1102 = vmul.f32 %v1098, %v1094
          %v1103 = vmul.f32 %v1099, %v1095
          %v1104 = vmul.f32 %v1100, %v1096
          %v1105 = vmul.f32 %v1101, %v1097
          %1106 = vst.msk [vmem:[%s430] sm:$0xff] %vm436, %v1102
          %1107 = vst.msk [vmem:[%s430 + $0x8] sm:$0xff] %vm436, %v1103
          %1108 = vst.msk [vmem:[%s430 + $0x10] sm:$0xff] %vm436, %v1104
          %1109 = vst.msk [vmem:[%s430 + $0x18] sm:$0xff] %vm436, %v1105
        $region96: #{tpu_custom_call.1} parent=51 // pred_fallthru
          _
        %s1110 = sand.u32 %s224, 1
        %s1111 = scalar_lea.sflag [#allocation5], %s1110
        %s1112 = sand.u32 %s224, 1
        %s1113 = smul.addr %s1112, 32
        %s1114 = scalar_lea.vmem [#allocation17], %s1113
        // Predicated region
        $region97: #{tpu_custom_call.1} parent=51 // pred_check
          %p1115 = pneg %p234
        $region98: #{tpu_custom_call.1} parent=51 // pred_check_branch
          %1117 = sbr.rel (%p1115) target = $region100
        $region99: #{tpu_custom_call.1} parent=51 // pred_region
          %s1119 = ssub.s32 512, 512
          %1120 = vsyncadd %s1111, %s1119
          %s1121 = smul.addr %s33, 4
          %s1122 = smul.addr %s1121, 128
          %s1123 = scalar_lea.hbm %s8, %s1122
          %s1124 = sshll.u32 %s1114, 4
          %s1125 = int_to_ptr.vmem [resolvable:$true] %s1124
          %1130 = dma.vmem_to_hbm [thread:$0]  %s1125, 512, %s1123, %s1111, 128, 128, 8
        $region100: #{tpu_custom_call.1} parent=51 // pred_fallthru
          _
      $region52: #{tpu_custom_call.1} parent=5 // pred_fallthru
        _
      %p1131 = scmp.le.s32.totalorder 2, %s24
      // Predicated region
      $region101: #{tpu_custom_call.1} parent=5 // pred_check
        %p1132 = pneg %p1131
      $region102: #{tpu_custom_call.1} parent=5 // pred_check_branch
        %1134 = sbr.rel (%p1132) target = $region104
      $region103: #{tpu_custom_call.1} parent=5 // pred_region
        %s1135 = ssub.s32 %s24, 2
        // Predicated region
        $region105: #{tpu_custom_call.1} parent=103 // pred_check
          %p1136 = pneg %p240
        $region106: #{tpu_custom_call.1} parent=103 // pred_check_branch
          %1138 = sbr.rel (%p1136) target = $region108
        $region107: #{tpu_custom_call.1} parent=103 // pred_region
          %s1139 = sand.u32 %s225, 1
          %s1140 = scalar_lea.sflag [#allocation5], %s1139
          %s1141 = sand.u32 %s225, 1
          %s1142 = smul.addr %s1141, 32
          %s1143 = scalar_lea.vmem [#allocation17], %s1142
          %1144 = dma.done %s1140, 512
        $region108: #{tpu_custom_call.1} parent=103 // pred_fallthru
          _
      $region104: #{tpu_custom_call.1} parent=5 // pred_fallthru
        _
    $region6: #{tpu_custom_call.1} parent=1 // loop_footer
      %s28 = sadd.s32 1, %s24
    $region7: #{tpu_custom_call.1} parent=1 // loop_footer_branch
      %23 = sbr.rel target = $region3
    $region8: #{tpu_custom_call.1} parent=1 // loop_exit
      _
    %1145 = vsyncpa [#allocation4], 1
    %s1146 = scalar_lea.sflag [#allocation4], 1
    %1147 = vsyncpa %s1146, 1
    %1148 = vsyncpa [#allocation7], 1
    %1149 = vsyncpa [#allocation10], 1
    %1150 = vsyncpa [#allocation13], 1
    %1151 = vsyncpa [#allocation16], 1
    %1152 = vsyncpa [#allocation5], 1
    %s1153 = scalar_lea.sflag [#allocation5], 1
    %1154 = vsyncpa %s1153, 1

</llo_original>
